<compile_context>
chip_gen: v6e
topology: v6e:2x2x1
jax: 0.10.0
libtpu: 0.0.40
codegen_flags: <defaults>
</compile_context>

<pallas_src>
import functools

import jax
import jax.numpy as jnp
from jax.experimental import pallas as pl
from jax.experimental.pallas import tpu as pltpu


def fused_net_kernel(x_ref, r1_ref, b1_ref, r2_ref, b2_ref,
                     wf1_ref, bf1_ref, wf2_ref, bf2_ref, out_ref):
    tb = x_ref.shape[1]                       # batch tile (multiple of 8)
    f32, bf16 = jnp.float32, jnp.bfloat16

    # ---- conv1: ONE K=140 bf16 matmul on the height-im2col'd image tile ----
    # LHS rows = i*TB + n (i = output row), K index = kh*28 + w.
    # RHS cols = r*256 + q*32 + c with output col j = 3q + r, channel c.
    lhs1 = x_ref[...].reshape(24 * tb, 140)                         # bf16
    y1 = jnp.dot(lhs1, r1_ref[...], preferred_element_type=f32)     # (24*TB,768)

    # ---- maxpool 3x3 stride 3 (bias hoisted past the max), ReLU ------------
    y1 = jnp.maximum(jnp.maximum(y1[:, 0:256], y1[:, 256:512]), y1[:, 512:768])
    y1 = y1.reshape(8, 3, tb, 256)                        # [p, i%3, n, q*32+c]
    y1 = jnp.maximum(jnp.maximum(y1[:, 0], y1[:, 1]), y1[:, 2])     # (8,TB,256)
    pooled1 = jnp.maximum(y1 + b1_ref[...], 0.0).astype(bf16)       # [p,n,q*32+c]

    # ---- conv2: ONE K=1280 bf16 matmul -------------------------------------
    # LHS rows = u*TB + n, K index = kh*256 + q*32 + c (256-lane aligned chunks).
    lhs2 = jnp.concatenate(
        [pooled1[kh:kh + 4].reshape(4 * tb, 256) for kh in range(5)], axis=-1)
    y2 = jnp.dot(lhs2, r2_ref[...], preferred_element_type=f32)     # (4*TB,256)

    # ---- maxpool 2x2 stride 2 (bias hoisted), ReLU --------------------------
    y2 = jnp.maximum(y2[:, 0:128], y2[:, 128:256])        # (4*TB, 128)
    y2 = y2.reshape(2, 2, tb, 128)                        # [s, u%2, n, t*64+d]
    y2 = jnp.maximum(y2[:, 0], y2[:, 1])                  # (2, TB, 128)
    pooled2 = jnp.maximum(y2 + b2_ref[...], 0.0).astype(bf16)       # [s,n,t*64+d]

    # ---- fc1 (one K=256 matmul) + ReLU + fc2 (lane-padded logits) -----------
    hin = jnp.concatenate([pooled2[0], pooled2[1]], axis=-1)        # (TB, 256)
    h = jnp.dot(hin, wf1_ref[...], preferred_element_type=f32) + bf1_ref[...]
    h = jnp.maximum(h, 0.0).astype(bf16)
    out_ref[...] = (jnp.dot(h, wf2_ref[...], preferred_element_type=f32)
                    + bf2_ref[...]).astype(out_ref.dtype)


def _prepare_operands(params):
    """Band / reorder the PyTorch weights so the kernel only does big matmuls."""
    w1, b1, w2, b2, wfc1, bfc1, wfc2, bfc2 = params
    f32, bf16 = jnp.float32, jnp.bfloat16

    # conv1 banded RHS: r1[kh*28 + w, r*256 + q*32 + c] = W1[c,0,kh, w-(3q+r)]
    w1t = jnp.transpose(w1[:, 0].astype(f32), (1, 2, 0))            # (kh, kw, c)
    kh_i = jnp.arange(5).reshape(5, 1, 1, 1, 1)
    w_i = jnp.arange(28).reshape(1, 28, 1, 1, 1)
    r_i = jnp.arange(3).reshape(1, 1, 3, 1, 1)
    q_i = jnp.arange(8).reshape(1, 1, 1, 8, 1)
    c_i = jnp.arange(32).reshape(1, 1, 1, 1, 32)
    kw_i = w_i - (3 * q_i + r_i)
    r1 = jnp.where((kw_i >= 0) & (kw_i <= 4),
                   w1t[kh_i, jnp.clip(kw_i, 0, 4), c_i], 0.0)
    r1 = r1.reshape(140, 768).astype(bf16)
    b1_l = jnp.tile(b1.astype(f32), 8).reshape(1, 256)              # cols q*32+c

    # conv2 banded RHS: r2[kh*256 + q*32 + c, r2*128 + t*64 + d] = W2[d,c,kh, q-(2t+r2)]
    w2t = jnp.transpose(w2.astype(f32), (2, 3, 1, 0))               # (kh, kw, c, d)
    kh_i = jnp.arange(5).reshape(5, 1, 1, 1, 1, 1)
    q_i = jnp.arange(8).reshape(1, 8, 1, 1, 1, 1)
    c_i = jnp.arange(32).reshape(1, 1, 32, 1, 1, 1)
    r2_i = jnp.arange(2).reshape(1, 1, 1, 2, 1, 1)
    t_i = jnp.arange(2).reshape(1, 1, 1, 1, 2, 1)
    d_i = jnp.arange(64).reshape(1, 1, 1, 1, 1, 64)
    kw_i = q_i - (2 * t_i + r2_i)
    r2 = jnp.where((kw_i >= 0) & (kw_i <= 4),
                   w2t[kh_i, jnp.clip(kw_i, 0, 4), c_i, d_i], 0.0)
    r2 = r2.reshape(1280, 256).astype(bf16)
    b2_l = jnp.tile(b2.astype(f32), 2).reshape(1, 128)              # cols t*64+d

    # fc1: wf1[s*128 + t*64 + d, o] = Wfc1[o, d*4 + s*2 + t]  (PyTorch flatten)
    wf1 = jnp.transpose(wfc1.astype(f32).reshape(200, 64, 2, 2), (2, 3, 1, 0))
    wf1 = wf1.reshape(256, 200).astype(bf16)
    bf1 = bfc1.astype(f32).reshape(1, 200)

    # fc2, lane-padded to 128 output columns
    wf2 = jnp.zeros((200, 128), f32).at[:, :10].set(wfc2.astype(f32).T).astype(bf16)
    bf2 = jnp.zeros((1, 128), f32).at[:, :10].set(bfc2.astype(f32).reshape(1, 10))
    return r1, b1_l, r2, b2_l, wf1, bf1, wf2, bf2


def _default_batch_tile():
    try:
        kind = jax.devices()[0].device_kind.lower()
    except Exception:
        return 128
    if "v5" in kind or "v6" in kind:
        return 256   # 128 MiB VMEM per TC: big tile amortizes grid overhead
    return 128       # v7x (64 MiB VMEM, 2 TCs) and anything unknown: stay safe


@functools.partial(jax.jit, static_argnames=("batch_tile",))
def net_forward(x, params, batch_tile=None):
    """x: (N, 1, 28, 28) float32 NCHW. Returns (N, 10) float32 logits."""
    n = x.shape[0]
    if batch_tile is None:
        batch_tile = _default_batch_tile()
    tb = min(batch_tile, 8 * pl.cdiv(n, 8))          # batch tile, multiple of 8
    n_pad = tb * pl.cdiv(n, tb)

    # Height-only im2col, laid out (i, n, kh*28 + w) so each batch tile is a
    # contiguous slice of the middle axis; bf16 so the MXU runs native-width.
    x_hw = x[:, 0, :, :].astype(jnp.bfloat16)                        # (N, 28, 28)
    if n_pad != n:
        x_hw = jnp.pad(x_hw, ((0, n_pad - n), (0, 0), (0, 0)))
    x_im = jnp.concatenate([x_hw[:, kh:kh + 24, :] for kh in range(5)], axis=-1)
    x_im = jnp.transpose(x_im, (1, 0, 2))                            # (24, N, 140)

    operands = _prepare_operands(params)

    def whole(shape):            # weights/biases: resident, constant index map
        return pl.BlockSpec(shape, lambda i: (0,) * len(shape))

    flops = 2 * n_pad * (24 * 140 * 768 + 4 * 1280 * 256 + 256 * 200 + 200 * 128)
    bytes_accessed = (x_im.size * x_im.dtype.itemsize + n_pad * 128 * 4
                      + sum(int(o.size) * o.dtype.itemsize for o in operands))

    logits_pad = pl.pallas_call(
        fused_net_kernel,
        out_shape=jax.ShapeDtypeStruct((n_pad, 128), jnp.float32),
        grid=(n_pad // tb,),
        in_specs=[
            pl.BlockSpec((24, tb, 140), lambda i: (0, i, 0)),        # im2col image
            whole((140, 768)), whole((1, 256)),                      # conv1
            whole((1280, 256)), whole((1, 128)),                     # conv2
            whole((256, 200)), whole((1, 200)),                      # fc1
            whole((200, 128)), whole((1, 128)),                      # fc2
        ],
        out_specs=pl.BlockSpec((tb, 128), lambda i: (i, 0)),
        compiler_params=pltpu.CompilerParams(
            dimension_semantics=("parallel",),
            # tb > 128 only defaults on v5e/v6e (128 MiB VMEM); v7x stays at 128.
            vmem_limit_bytes=(80 if tb > 128 else 48) * 1024 * 1024,
        ),
        cost_estimate=pl.CostEstimate(flops=flops, transcendentals=0,
                                      bytes_accessed=bytes_accessed),
    )(x_im, *operands)
    return logits_pad[:n, :10]


def reference_forward(x, params, compute_dtype=jnp.float32):
    """Pure-JAX reference replicating the PyTorch forward.

    With compute_dtype=bfloat16 it mirrors the kernel's mixed precision
    (bf16 operands, f32 accumulation) so the match can be asserted tightly.
    """
    w1, b1, w2, b2, wfc1, bfc1, wfc2, bfc2 = params
    cd = compute_dtype
    dn = ('NCHW', 'OIHW', 'NCHW')
    hp = jax.lax.Precision.HIGHEST
    y = jax.lax.conv_general_dilated(x.astype(cd), w1.astype(cd), (1, 1), 'VALID',
                                     dimension_numbers=dn, precision=hp,
                                     preferred_element_type=jnp.float32)
    y = y + b1[None, :, None, None]
    y = jax.lax.reduce_window(y, -jnp.inf, jax.lax.max, (1, 1, 3, 3), (1, 1, 3, 3), 'VALID')
    y = jnp.maximum(y, 0.0)
    y = jax.lax.conv_general_dilated(y.astype(cd), w2.astype(cd), (1, 1), 'VALID',
                                     dimension_numbers=dn, precision=hp,
                                     preferred_element_type=jnp.float32)
    y = y + b2[None, :, None, None]
    y = jax.lax.reduce_window(y, -jnp.inf, jax.lax.max, (1, 1, 2, 2), (1, 1, 2, 2), 'VALID')
    y = jnp.maximum(y, 0.0)
    y = y.reshape(y.shape[0], -1)                        # (N, 256) = (c, h, w)
    h = jnp.dot(y.astype(cd), wfc1.T.astype(cd), precision=hp,
                preferred_element_type=jnp.float32) + bfc1
    h = jnp.maximum(h, 0.0)
    return jnp.dot(h.astype(cd), wfc2.T.astype(cd), precision=hp,
                   preferred_element_type=jnp.float32) + bfc2


if __name__ == "__main__":
    key = jax.random.PRNGKey(0)
    ks = jax.random.split(key, 9)
    # Deterministic synthetic parameters (shapes from Net.__init__).
    params = (
        0.10 * jax.random.normal(ks[0], (32, 1, 5, 5), jnp.float32),   # conv1.weight
        0.10 * jax.random.normal(ks[1], (32,), jnp.float32),           # conv1.bias
        0.05 * jax.random.normal(ks[2], (64, 32, 5, 5), jnp.float32),  # conv2.weight
        0.05 * jax.random.normal(ks[3], (64,), jnp.float32),           # conv2.bias
        0.05 * jax.random.normal(ks[4], (200, 256), jnp.float32),      # fc1.weight
        0.05 * jax.random.normal(ks[5], (200,), jnp.float32),          # fc1.bias
        0.05 * jax.random.normal(ks[6], (10, 200), jnp.float32),       # fc2.weight
        0.05 * jax.random.normal(ks[7], (10,), jnp.float32),           # fc2.bias
    )
    # batch=2, single channel, 28x28 (the only spatial size compatible with fc1=256)
    x = jax.random.normal(ks[8], (2, 1, 28, 28), jnp.float32)

    out = jax.block_until_ready(net_forward(x, params))
    assert out.shape == (2, 10)
    assert bool(jnp.all(jnp.isfinite(out)))

    # Tight check vs. a precision-matched (bf16 operands, f32 accum) reference.
    ref_bf16 = reference_forward(x, params, compute_dtype=jnp.bfloat16)
    err_b = float(jnp.max(jnp.abs(out - ref_bf16)))
    assert jnp.allclose(out, ref_bf16, atol=2e-2, rtol=2e-2), err_b

    # Looser sanity check vs. the exact float32 reference (bf16 operand rounding).
    ref_f32 = reference_forward(x, params)
    err_f = float(jnp.max(jnp.abs(out - ref_f32)))
    assert jnp.allclose(out, ref_f32, atol=1e-1, rtol=1e-1), err_f

    print("KERNEL_OK")
</pallas_src>

<mosaic_0001>
module attributes {stable_mosaic.version = 11 : i64} {
  func.func @fused_net_kernel(%arg0: i32, %arg1: memref<24x8x140xbf16, #tpu.memory_space<vmem>>, %arg2: memref<140x768xbf16, #tpu.memory_space<vmem>>, %arg3: memref<1x256xf32, #tpu.memory_space<vmem>>, %arg4: memref<1280x256xbf16, #tpu.memory_space<vmem>>, %arg5: memref<1x128xf32, #tpu.memory_space<vmem>>, %arg6: memref<256x200xbf16, #tpu.memory_space<vmem>>, %arg7: memref<1x200xf32, #tpu.memory_space<vmem>>, %arg8: memref<200x128xbf16, #tpu.memory_space<vmem>>, %arg9: memref<1x128xf32, #tpu.memory_space<vmem>>, %arg10: memref<8x128xf32, #tpu.memory_space<vmem>>) attributes {dimension_semantics = [#tpu.dimension_semantics<parallel>], iteration_bounds = array<i64: 1>, scalar_prefetch = 0 : i64, scratch_operands = 0 : i64, tpu.core_type = #tpu.core_type<tc>, window_params = [{transform_indices = @transform_0, window_bounds = array<i64: 24, 8, 140>}, {pipeline_mode = #tpu.pipeline_mode<synchronous>, transform_indices = @transform_1, window_bounds = array<i64: 140, 768>}, {pipeline_mode = #tpu.pipeline_mode<synchronous>, transform_indices = @transform_2, window_bounds = array<i64: 1, 256>}, {pipeline_mode = #tpu.pipeline_mode<synchronous>, transform_indices = @transform_3, window_bounds = array<i64: 1280, 256>}, {pipeline_mode = #tpu.pipeline_mode<synchronous>, transform_indices = @transform_4, window_bounds = array<i64: 1, 128>}, {pipeline_mode = #tpu.pipeline_mode<synchronous>, transform_indices = @transform_5, window_bounds = array<i64: 256, 200>}, {pipeline_mode = #tpu.pipeline_mode<synchronous>, transform_indices = @transform_6, window_bounds = array<i64: 1, 200>}, {pipeline_mode = #tpu.pipeline_mode<synchronous>, transform_indices = @transform_7, window_bounds = array<i64: 200, 128>}, {pipeline_mode = #tpu.pipeline_mode<synchronous>, transform_indices = @transform_8, window_bounds = array<i64: 1, 128>}, {transform_indices = @transform_9, window_bounds = array<i64: 8, 128>}]} {
    %c0 = arith.constant 0 : index
    %c0_0 = arith.constant 0 : index
    %c0_1 = arith.constant 0 : index
    %0 = vector.load %arg1[%c0, %c0_0, %c0_1] : memref<24x8x140xbf16, #tpu.memory_space<vmem>>, vector<24x8x140xbf16>
    %1 = vector.shape_cast %0 : vector<24x8x140xbf16> to vector<192x140xbf16>
    %c0_2 = arith.constant 0 : index
    %c0_3 = arith.constant 0 : index
    %2 = vector.load %arg2[%c0_2, %c0_3] : memref<140x768xbf16, #tpu.memory_space<vmem>>, vector<140x768xbf16>
    %cst = arith.constant dense<0.000000e+00> : vector<192x768xf32>
    %3 = tpu.matmul %1, %2, %cst {dimension_numbers = #tpu.dot_dimension_numbers<[1], [0], [0], [1], [0, 0, 1, 1], [], []>} : vector<192x140xbf16>, vector<140x768xbf16>, vector<192x768xf32> -> vector<192x768xf32>
    %4 = vector.extract_strided_slice %3 {offsets = [0, 0], sizes = [192, 256], strides = [1, 1]} : vector<192x768xf32> to vector<192x256xf32>
    %5 = vector.extract_strided_slice %3 {offsets = [0, 256], sizes = [192, 256], strides = [1, 1]} : vector<192x768xf32> to vector<192x256xf32>
    %6 = arith.maximumf %4, %5 : vector<192x256xf32>
    %7 = vector.extract_strided_slice %3 {offsets = [0, 512], sizes = [192, 256], strides = [1, 1]} : vector<192x768xf32> to vector<192x256xf32>
    %8 = arith.maximumf %6, %7 : vector<192x256xf32>
    %9 = vector.shape_cast %8 : vector<192x256xf32> to vector<8x3x8x256xf32>
    %10 = vector.extract_strided_slice %9 {offsets = [0, 0, 0, 0], sizes = [8, 1, 8, 256], strides = [1, 1, 1, 1]} : vector<8x3x8x256xf32> to vector<8x1x8x256xf32>
    %11 = vector.shape_cast %10 : vector<8x1x8x256xf32> to vector<8x8x256xf32>
    %12 = vector.extract_strided_slice %9 {offsets = [0, 1, 0, 0], sizes = [8, 1, 8, 256], strides = [1, 1, 1, 1]} : vector<8x3x8x256xf32> to vector<8x1x8x256xf32>
    %13 = vector.shape_cast %12 : vector<8x1x8x256xf32> to vector<8x8x256xf32>
    %14 = arith.maximumf %11, %13 : vector<8x8x256xf32>
    %15 = vector.extract_strided_slice %9 {offsets = [0, 2, 0, 0], sizes = [8, 1, 8, 256], strides = [1, 1, 1, 1]} : vector<8x3x8x256xf32> to vector<8x1x8x256xf32>
    %16 = vector.shape_cast %15 : vector<8x1x8x256xf32> to vector<8x8x256xf32>
    %17 = arith.maximumf %14, %16 : vector<8x8x256xf32>
    %c0_4 = arith.constant 0 : index
    %c0_5 = arith.constant 0 : index
    %18 = vector.load %arg3[%c0_4, %c0_5] : memref<1x256xf32, #tpu.memory_space<vmem>>, vector<1x256xf32>
    %19 = vector.shape_cast %18 : vector<1x256xf32> to vector<1x1x256xf32>
    %20 = vector.broadcast %19 : vector<1x1x256xf32> to vector<8x8x256xf32>
    %21 = arith.addf %17, %20 : vector<8x8x256xf32>
    %cst_6 = arith.constant 0.000000e+00 : f32
    %22 = vector.broadcast %cst_6 : f32 to vector<8x8x256xf32>
    %23 = arith.maximumf %21, %22 : vector<8x8x256xf32>
    %24 = arith.truncf %23 : vector<8x8x256xf32> to vector<8x8x256xbf16>
    %25 = vector.extract_strided_slice %24 {offsets = [0, 0, 0], sizes = [4, 8, 256], strides = [1, 1, 1]} : vector<8x8x256xbf16> to vector<4x8x256xbf16>
    %26 = vector.shape_cast %25 : vector<4x8x256xbf16> to vector<32x256xbf16>
    %27 = vector.extract_strided_slice %24 {offsets = [1, 0, 0], sizes = [4, 8, 256], strides = [1, 1, 1]} : vector<8x8x256xbf16> to vector<4x8x256xbf16>
    %28 = vector.shape_cast %27 : vector<4x8x256xbf16> to vector<32x256xbf16>
    %29 = vector.extract_strided_slice %24 {offsets = [2, 0, 0], sizes = [4, 8, 256], strides = [1, 1, 1]} : vector<8x8x256xbf16> to vector<4x8x256xbf16>
    %30 = vector.shape_cast %29 : vector<4x8x256xbf16> to vector<32x256xbf16>
    %31 = vector.extract_strided_slice %24 {offsets = [3, 0, 0], sizes = [4, 8, 256], strides = [1, 1, 1]} : vector<8x8x256xbf16> to vector<4x8x256xbf16>
    %32 = vector.shape_cast %31 : vector<4x8x256xbf16> to vector<32x256xbf16>
    %33 = vector.extract_strided_slice %24 {offsets = [4, 0, 0], sizes = [4, 8, 256], strides = [1, 1, 1]} : vector<8x8x256xbf16> to vector<4x8x256xbf16>
    %34 = vector.shape_cast %33 : vector<4x8x256xbf16> to vector<32x256xbf16>
    %35 = tpu.concatenate %26, %28, %30, %32, %34 in 1 : vector<32x256xbf16>, vector<32x256xbf16>, vector<32x256xbf16>, vector<32x256xbf16>, vector<32x256xbf16> -> vector<32x1280xbf16>
    %c0_7 = arith.constant 0 : index
    %c0_8 = arith.constant 0 : index
    %36 = vector.load %arg4[%c0_7, %c0_8] : memref<1280x256xbf16, #tpu.memory_space<vmem>>, vector<1280x256xbf16>
    %cst_9 = arith.constant dense<0.000000e+00> : vector<32x256xf32>
    %37 = tpu.matmul %35, %36, %cst_9 {dimension_numbers = #tpu.dot_dimension_numbers<[1], [0], [0], [1], [0, 0, 1, 1], [], []>} : vector<32x1280xbf16>, vector<1280x256xbf16>, vector<32x256xf32> -> vector<32x256xf32>
    %38 = vector.extract_strided_slice %37 {offsets = [0, 0], sizes = [32, 128], strides = [1, 1]} : vector<32x256xf32> to vector<32x128xf32>
    %39 = vector.extract_strided_slice %37 {offsets = [0, 128], sizes = [32, 128], strides = [1, 1]} : vector<32x256xf32> to vector<32x128xf32>
    %40 = arith.maximumf %38, %39 : vector<32x128xf32>
    %41 = vector.shape_cast %40 : vector<32x128xf32> to vector<2x2x8x128xf32>
    %42 = vector.extract_strided_slice %41 {offsets = [0, 0, 0, 0], sizes = [2, 1, 8, 128], strides = [1, 1, 1, 1]} : vector<2x2x8x128xf32> to vector<2x1x8x128xf32>
    %43 = vector.shape_cast %42 : vector<2x1x8x128xf32> to vector<2x8x128xf32>
    %44 = vector.extract_strided_slice %41 {offsets = [0, 1, 0, 0], sizes = [2, 1, 8, 128], strides = [1, 1, 1, 1]} : vector<2x2x8x128xf32> to vector<2x1x8x128xf32>
    %45 = vector.shape_cast %44 : vector<2x1x8x128xf32> to vector<2x8x128xf32>
    %46 = arith.maximumf %43, %45 : vector<2x8x128xf32>
    %c0_10 = arith.constant 0 : index
    %c0_11 = arith.constant 0 : index
    %47 = vector.load %arg5[%c0_10, %c0_11] : memref<1x128xf32, #tpu.memory_space<vmem>>, vector<1x128xf32>
    %48 = vector.shape_cast %47 : vector<1x128xf32> to vector<1x1x128xf32>
    %49 = vector.broadcast %48 : vector<1x1x128xf32> to vector<2x8x128xf32>
    %50 = arith.addf %46, %49 : vector<2x8x128xf32>
    %cst_12 = arith.constant 0.000000e+00 : f32
    %51 = vector.broadcast %cst_12 : f32 to vector<2x8x128xf32>
    %52 = arith.maximumf %50, %51 : vector<2x8x128xf32>
    %53 = arith.truncf %52 : vector<2x8x128xf32> to vector<2x8x128xbf16>
    %54 = vector.extract_strided_slice %53 {offsets = [0, 0, 0], sizes = [1, 8, 128], strides = [1, 1, 1]} : vector<2x8x128xbf16> to vector<1x8x128xbf16>
    %55 = vector.shape_cast %54 : vector<1x8x128xbf16> to vector<8x128xbf16>
    %56 = vector.extract_strided_slice %53 {offsets = [1, 0, 0], sizes = [1, 8, 128], strides = [1, 1, 1]} : vector<2x8x128xbf16> to vector<1x8x128xbf16>
    %57 = vector.shape_cast %56 : vector<1x8x128xbf16> to vector<8x128xbf16>
    %58 = tpu.concatenate %55, %57 in 1 : vector<8x128xbf16>, vector<8x128xbf16> -> vector<8x256xbf16>
    %c0_13 = arith.constant 0 : index
    %c0_14 = arith.constant 0 : index
    %59 = vector.load %arg6[%c0_13, %c0_14] : memref<256x200xbf16, #tpu.memory_space<vmem>>, vector<256x200xbf16>
    %cst_15 = arith.constant dense<0.000000e+00> : vector<8x200xf32>
    %60 = tpu.matmul %58, %59, %cst_15 {dimension_numbers = #tpu.dot_dimension_numbers<[1], [0], [0], [1], [0, 0, 1, 1], [], []>} : vector<8x256xbf16>, vector<256x200xbf16>, vector<8x200xf32> -> vector<8x200xf32>
    %c0_16 = arith.constant 0 : index
    %c0_17 = arith.constant 0 : index
    %61 = vector.load %arg7[%c0_16, %c0_17] : memref<1x200xf32, #tpu.memory_space<vmem>>, vector<1x200xf32>
    %62 = vector.broadcast %61 : vector<1x200xf32> to vector<8x200xf32>
    %63 = arith.addf %60, %62 : vector<8x200xf32>
    %cst_18 = arith.constant 0.000000e+00 : f32
    %64 = vector.broadcast %cst_18 : f32 to vector<8x200xf32>
    %65 = arith.maximumf %63, %64 : vector<8x200xf32>
    %66 = arith.truncf %65 : vector<8x200xf32> to vector<8x200xbf16>
    %c0_19 = arith.constant 0 : index
    %c0_20 = arith.constant 0 : index
    %67 = vector.load %arg8[%c0_19, %c0_20] : memref<200x128xbf16, #tpu.memory_space<vmem>>, vector<200x128xbf16>
    %cst_21 = arith.constant dense<0.000000e+00> : vector<8x128xf32>
    %68 = tpu.matmul %66, %67, %cst_21 {dimension_numbers = #tpu.dot_dimension_numbers<[1], [0], [0], [1], [0, 0, 1, 1], [], []>} : vector<8x200xbf16>, vector<200x128xbf16>, vector<8x128xf32> -> vector<8x128xf32>
    %c0_22 = arith.constant 0 : index
    %c0_23 = arith.constant 0 : index
    %69 = vector.load %arg9[%c0_22, %c0_23] : memref<1x128xf32, #tpu.memory_space<vmem>>, vector<1x128xf32>
    %70 = vector.broadcast %69 : vector<1x128xf32> to vector<8x128xf32>
    %71 = arith.addf %68, %70 : vector<8x128xf32>
    %c0_24 = arith.constant 0 : index
    %c0_25 = arith.constant 0 : index
    %72 = vector.load %arg10[%c0_24, %c0_25] : memref<8x128xf32, #tpu.memory_space<vmem>>, vector<8x128xf32>
    tpu.vector_store %arg10[%c0_24, %c0_25], %71 {strides = array<i32>} : memref<8x128xf32, #tpu.memory_space<vmem>>, vector<8x128xf32>,
    return
  }
  func.func @transform_0(%arg0: i32) -> (i32, i32, i32) {
    %c0_i32 = arith.constant 0 : i32
    %c0_i32_0 = arith.constant 0 : i32
    %c0_i32_1 = arith.constant 0 : i32
    return %c0_i32, %arg0, %c0_i32_0 : i32, i32, i32
  }
  func.func @transform_1(%arg0: i32) -> (i32, i32) {
    %c0_i32 = arith.constant 0 : i32
    %c0_i32_0 = arith.constant 0 : i32
    %c0_i32_1 = arith.constant 0 : i32
    return %c0_i32, %c0_i32_0 : i32, i32
  }
  func.func @transform_2(%arg0: i32) -> (i32, i32) {
    %c0_i32 = arith.constant 0 : i32
    %c0_i32_0 = arith.constant 0 : i32
    %c0_i32_1 = arith.constant 0 : i32
    return %c0_i32, %c0_i32_0 : i32, i32
  }
  func.func @transform_3(%arg0: i32) -> (i32, i32) {
    %c0_i32 = arith.constant 0 : i32
    %c0_i32_0 = arith.constant 0 : i32
    %c0_i32_1 = arith.constant 0 : i32
    return %c0_i32, %c0_i32_0 : i32, i32
  }
  func.func @transform_4(%arg0: i32) -> (i32, i32) {
    %c0_i32 = arith.constant 0 : i32
    %c0_i32_0 = arith.constant 0 : i32
    %c0_i32_1 = arith.constant 0 : i32
    return %c0_i32, %c0_i32_0 : i32, i32
  }
  func.func @transform_5(%arg0: i32) -> (i32, i32) {
    %c0_i32 = arith.constant 0 : i32
    %c0_i32_0 = arith.constant 0 : i32
    %c0_i32_1 = arith.constant 0 : i32
    return %c0_i32, %c0_i32_0 : i32, i32
  }
  func.func @transform_6(%arg0: i32) -> (i32, i32) {
    %c0_i32 = arith.constant 0 : i32
    %c0_i32_0 = arith.constant 0 : i32
    %c0_i32_1 = arith.constant 0 : i32
    return %c0_i32, %c0_i32_0 : i32, i32
  }
  func.func @transform_7(%arg0: i32) -> (i32, i32) {
    %c0_i32 = arith.constant 0 : i32
    %c0_i32_0 = arith.constant 0 : i32
    %c0_i32_1 = arith.constant 0 : i32
    return %c0_i32, %c0_i32_0 : i32, i32
  }
  func.func @transform_8(%arg0: i32) -> (i32, i32) {
    %c0_i32 = arith.constant 0 : i32
    %c0_i32_0 = arith.constant 0 : i32
    %c0_i32_1 = arith.constant 0 : i32
    return %c0_i32, %c0_i32_0 : i32, i32
  }
  func.func @transform_9(%arg0: i32) -> (i32, i32) {
    %c0_i32 = arith.constant 0 : i32
    %c0_i32_0 = arith.constant 0 : i32
    return %arg0, %c0_i32 : i32, i32
  }
}

</mosaic_0001>

<llo_original>
// kernel: tile.13
$region0: #{tile.13}
  #allocation0 [shape = 's32[1]{0}', space=sflag, size = 0x4, scoped, tag = 'scoped memory for tile.13']
  %s0 = inlined_call_operand.vmem [shape: f32[32], index: 0, kind: input, shape index: {}]
  %s1 = inlined_call_operand.vmem [shape: f32[8,32], index: 1, kind: output, shape index: {}]
  // Predicated region
  $region2: #{tile.13} parent=0 // pred_check
    _
  $region3: #{tile.13} parent=0 // pred_check_branch
    %3 = sbr.rel (0) target = $region5
  $region4: #{tile.13} parent=0 // pred_region
    _
  $region5: #{tile.13} parent=0 // pred_fallthru
    _
  %v4 = vld [vmem:[%s0] ss:$0 sm:$0xff]
  %5 = vst [vmem:[%s1] sm:$0xff] %v4

// kernel: tile.14
$region0: #{tile.14}
  %s0 = inlined_call_operand.vmem [shape: f32[8,32], index: 0, kind: input, shape index: {}]
  %s1 = inlined_call_operand.vmem [shape: f32[1,256], index: 1, kind: output, shape index: {}]
  $region1: #{tile.14} parent=0
    #allocation0 [shape = 'u8[8192]{0}', space=vmem, size = 0x2000, scoped, tag = 'scoped mem for output reshape']
    %s2 = smov 3
    %v3 = vld [vmem:[%s0] ss:$4 sm:%s2]
    %vm4 = vcmask 261120
    %5 = vst.msk [vmem:[#allocation0] ss:$8 sm:$0x3] %vm4, %v3
    %s6 = scalar_lea.vmem %s0, 3
    %s7 = smov 3
    %v8 = vld [vmem:[%s6] ss:$4 sm:%s7]
    %9 = vrot.lane.b32.xlu0 %v8, 96
    %v10 = vpop.permute.xlu0 %9
    %vm11 = vcmask 1048320
    %12 = vst.msk [vmem:[#allocation0] ss:$8 sm:$0x3] %vm11, %v10
    %s13 = scalar_lea.vmem %s0, 2
    %s14 = smov 3
    %v15 = vld [vmem:[%s13] ss:$4 sm:%s14]
    %16 = vrot.lane.b32.xlu0 %v15, 64
    %v17 = vpop.permute.xlu0 %16
    %vm18 = vcmask 785920
    %19 = vst.msk [vmem:[#allocation0] ss:$8 sm:$0x3] %vm18, %v17
    %s20 = scalar_lea.vmem %s0, 1
    %s21 = smov 3
    %v22 = vld [vmem:[%s20] ss:$4 sm:%s21]
    %23 = vrot.lane.b32.xlu0 %v22, 32
    %v24 = vpop.permute.xlu0 %23
    %vm25 = vcmask 523520
    %26 = vst.msk [vmem:[#allocation0] ss:$8 sm:$0x3] %vm25, %v24
    %s28 = sshll.u32 1, 1
    %s29 = ssub.s32 %s28, 1
    %v31 = vld [vmem:[#allocation0] sm:%s29]
    %s32 = sshll.u32 1, 1
    %s33 = ssub.s32 %s32, 1
    %34 = vst [vmem:[%s1] sm:%s33] %v31
    %s35 = scalar_lea.vmem [#allocation0], 8
    %v36 = vld [vmem:[%s35] sm:%s29]
    %s37 = sshll.u32 1, 1
    %s38 = ssub.s32 %s37, 1
    %s39 = scalar_lea.vmem %s1, 1
    %40 = vst [vmem:[%s39] sm:%s38] %v36

// kernel: tile.18
$region0: #{tile.18}
  #allocation0 [shape = 's32[1]{0}', space=sflag, size = 0x4, scoped, tag = 'scoped memory for tile.18']
  %s0 = inlined_call_operand.vmem [shape: f32[64], index: 0, kind: input, shape index: {}]
  %s1 = inlined_call_operand.vmem [shape: f32[2,64], index: 1, kind: output, shape index: {}]
  // Predicated region
  $region2: #{tile.18} parent=0 // pred_check
    _
  $region3: #{tile.18} parent=0 // pred_check_branch
    %3 = sbr.rel (0) target = $region5
  $region4: #{tile.18} parent=0 // pred_region
    _
  $region5: #{tile.18} parent=0 // pred_fallthru
    _
  %v4 = vld [vmem:[%s0] ss:$0 sm:$0xff]
  %5 = vst [vmem:[%s1] sm:$0x3] %v4

// kernel: tile.19
$region0: #{tile.19}
  %s0 = inlined_call_operand.vmem [shape: f32[2,64], index: 0, kind: input, shape index: {}]
  %s1 = inlined_call_operand.vmem [shape: f32[1,128], index: 1, kind: output, shape index: {}]
  $region1: #{tile.19} parent=0
    #allocation0 [shape = 'u8[4096]{0}', space=vmem, size = 0x1000, scoped, tag = 'scoped mem for output reshape']
    #allocation1 [shape = 'u8[4096]{0}', space=vmem, size = 0x1000, scoped, tag = 'scoped mem for input reshape']
    %s3 = sshll.u32 1, 2
    %s4 = ssub.s32 %s3, 1
    %v5 = vld [vmem:[%s0] sm:%s4]
    %6 = vst [vmem:[#allocation1] sm:%s4] %v5
    %v7 = vld [vmem:[#allocation1] sm:$0x1]
    %vm8 = vcmask 523264
    %9 = vst.msk [vmem:[#allocation0] sm:$0x1] %vm8, %v7
    %s10 = scalar_lea.vmem [#allocation1], 1
    %v11 = vld [vmem:[%s10] sm:$0x1]
    %12 = vrot.lane.b32.xlu0 %v11, 64
    %v13 = vpop.permute.xlu0 %12
    %vm14 = vcmask 1048064
    %15 = vst.msk [vmem:[#allocation0] sm:$0x1] %vm14, %v13
    %s17 = sshll.u32 1, 1
    %s18 = ssub.s32 %s17, 1
    %v20 = vld [vmem:[#allocation0] sm:%s18]
    %s21 = sshll.u32 1, 1
    %s22 = ssub.s32 %s21, 1
    %23 = vst [vmem:[%s1] sm:%s22] %v20

// kernel: net_forward.1
$region0: #{net_forward.1}
  #allocation0 [shape = 'u32[]', space=smem, size = 0x4, offset = 0x4, fixed_abs, tag = 'smem constant byte address 0x4 - core index']
  #allocation1 [shape = 'u32[144,128]{1,0:T(1,128)}', space=vmem, size = 0x12000, scoped, tag = 'internal scratch']
  %s0 = inlined_call_operand.vmem [shape: bf16[24,8,140], index: 0, kind: input, shape index: {}]
  %s1 = inlined_call_operand.vmem [shape: bf16[140,768], index: 1, kind: input, shape index: {}]
  %s2 = inlined_call_operand.vmem [shape: f32[1,256], index: 2, kind: input, shape index: {}]
  %s3 = inlined_call_operand.vmem [shape: bf16[1280,256], index: 3, kind: input, shape index: {}]
  %s4 = inlined_call_operand.vmem [shape: f32[1,128], index: 4, kind: input, shape index: {}]
  %s5 = inlined_call_operand.vmem [shape: bf16[256,200], index: 5, kind: input, shape index: {}]
  %s6 = inlined_call_operand.vmem [shape: f32[1,200], index: 6, kind: input, shape index: {}]
  %s7 = inlined_call_operand.vmem [shape: bf16[200,128], index: 7, kind: input, shape index: {}]
  %s8 = inlined_call_operand.vmem [shape: f32[1,128], index: 8, kind: input, shape index: {}]
  %s9 = inlined_call_operand.vmem [shape: f32[8,128], index: 9, kind: output, shape index: {}]
  %s10 = sld [smem:[#allocation0]]
  $region46: #{net_forward.1} parent=0
    _
  %s12 = ssub.s32 1, %s10
  %s13 = scalar_select 0, %s12, %s10
  // Predicated region
  $region2: #{net_forward.1} parent=0 // pred_check
    _
  $region3: #{net_forward.1} parent=0 // pred_check_branch
    %15 = sbr.rel (0) target = $region5
  $region4: #{net_forward.1} parent=0 // pred_region
    _
  $region5: #{net_forward.1} parent=0 // pred_fallthru
    _
  // Predicated region
  $region6: #{net_forward.1} parent=0 // pred_check
    _
  $region7: #{net_forward.1} parent=0 // pred_check_branch
    %17 = sbr.rel (0) target = $region9
  $region8: #{net_forward.1} parent=0 // pred_region
    _
  $region9: #{net_forward.1} parent=0 // pred_fallthru
    _
  // Predicated region
  $region10: #{net_forward.1} parent=0 // pred_check
    _
  $region11: #{net_forward.1} parent=0 // pred_check_branch
    %19 = sbr.rel (0) target = $region13
  $region12: #{net_forward.1} parent=0 // pred_region
    _
  $region13: #{net_forward.1} parent=0 // pred_fallthru
    _
  // Predicated region
  $region14: #{net_forward.1} parent=0 // pred_check
    _
  $region15: #{net_forward.1} parent=0 // pred_check_branch
    %21 = sbr.rel (0) target = $region17
  $region16: #{net_forward.1} parent=0 // pred_region
    _
  $region17: #{net_forward.1} parent=0 // pred_fallthru
    _
  // Predicated region
  $region18: #{net_forward.1} parent=0 // pred_check
    _
  $region19: #{net_forward.1} parent=0 // pred_check_branch
    %23 = sbr.rel (0) target = $region21
  $region20: #{net_forward.1} parent=0 // pred_region
    _
  $region21: #{net_forward.1} parent=0 // pred_fallthru
    _
  // Predicated region
  $region22: #{net_forward.1} parent=0 // pred_check
    _
  $region23: #{net_forward.1} parent=0 // pred_check_branch
    %25 = sbr.rel (0) target = $region25
  $region24: #{net_forward.1} parent=0 // pred_region
    _
  $region25: #{net_forward.1} parent=0 // pred_fallthru
    _
  // Predicated region
  $region26: #{net_forward.1} parent=0 // pred_check
    _
  $region27: #{net_forward.1} parent=0 // pred_check_branch
    %27 = sbr.rel (0) target = $region29
  $region28: #{net_forward.1} parent=0 // pred_region
    _
  $region29: #{net_forward.1} parent=0 // pred_fallthru
    _
  // Predicated region
  $region30: #{net_forward.1} parent=0 // pred_check
    _
  $region31: #{net_forward.1} parent=0 // pred_check_branch
    %29 = sbr.rel (0) target = $region33
  $region32: #{net_forward.1} parent=0 // pred_region
    _
  $region33: #{net_forward.1} parent=0 // pred_fallthru
    _
  // Predicated region
  $region34: #{net_forward.1} parent=0 // pred_check
    _
  $region35: #{net_forward.1} parent=0 // pred_check_branch
    %31 = sbr.rel (0) target = $region37
  $region36: #{net_forward.1} parent=0 // pred_region
    _
  $region37: #{net_forward.1} parent=0 // pred_fallthru
    _
  %v33 = vld [vmem:[%s0] sm:$0xff]
  %v34 = vld [vmem:[%s0 + $0x8] sm:$0xff]
  %v35 = vld [vmem:[%s0 + $0x10] sm:$0xff]
  %v36 = vld [vmem:[%s0 + $0x18] sm:$0xff]
  %v37 = vld [vmem:[%s0 + $0x20] sm:$0xff]
  %v38 = vld [vmem:[%s0 + $0x28] sm:$0xff]
  %v39 = vld [vmem:[%s0 + $0x30] sm:$0xff]
  %v40 = vld [vmem:[%s0 + $0x38] sm:$0xff]
  %v41 = vld [vmem:[%s0 + $0x40] sm:$0xff]
  %v42 = vld [vmem:[%s0 + $0x48] sm:$0xff]
  %v43 = vld [vmem:[%s0 + $0x50] sm:$0xff]
  %v44 = vld [vmem:[%s0 + $0x58] sm:$0xff]
  %v45 = vld [vmem:[%s0 + $0x60] sm:$0xff]
  %v46 = vld [vmem:[%s0 + $0x68] sm:$0xff]
  %v47 = vld [vmem:[%s0 + $0x70] sm:$0xff]
  %v48 = vld [vmem:[%s0 + $0x78] sm:$0xff]
  %v49 = vld [vmem:[%s0 + $0x80] sm:$0xff]
  %v50 = vld [vmem:[%s0 + $0x88] sm:$0xff]
  %v51 = vld [vmem:[%s0 + $0x90] sm:$0xff]
  %v52 = vld [vmem:[%s0 + $0x98] sm:$0xff]
  %v53 = vld [vmem:[%s0 + $0xa0] sm:$0xff]
  %v54 = vld [vmem:[%s0 + $0xa8] sm:$0xff]
  %v55 = vld [vmem:[%s0 + $0xb0] sm:$0xff]
  %v56 = vld [vmem:[%s0 + $0xb8] sm:$0xff]
  %v57 = vld [vmem:[%s1] sm:$0xff]
  %v58 = vld [vmem:[%s1 + $0x8] sm:$0xff]
  %v59 = vld [vmem:[%s1 + $0x10] sm:$0xff]
  %v60 = vld [vmem:[%s1 + $0x18] sm:$0xff]
  %v61 = vld [vmem:[%s1 + $0x20] sm:$0xff]
  %v62 = vld [vmem:[%s1 + $0x28] sm:$0xff]
  %v63 = vld [vmem:[%s1 + $0x30] sm:$0xff]
  %v64 = vld [vmem:[%s1 + $0x38] sm:$0xff]
  %v65 = vld [vmem:[%s1 + $0x40] sm:$0xff]
  %v66 = vld [vmem:[%s1 + $0x48] sm:$0xff]
  %v67 = vld [vmem:[%s1 + $0x50] sm:$0xff]
  %v68 = vld [vmem:[%s1 + $0x58] sm:$0xff]
  %v69 = vld [vmem:[%s1 + $0x60] sm:$0xff]
  %v70 = vld [vmem:[%s1 + $0x68] sm:$0xff]
  %v71 = vld [vmem:[%s1 + $0x70] sm:$0xff]
  %v72 = vld [vmem:[%s1 + $0x78] sm:$0xff]
  %v73 = vld [vmem:[%s1 + $0x80] sm:$0xff]
  %v74 = vld [vmem:[%s1 + $0x88] sm:$0xff]
  %v75 = vld [vmem:[%s1 + $0x90] sm:$0xff]
  %v76 = vld [vmem:[%s1 + $0x98] sm:$0xff]
  %v77 = vld [vmem:[%s1 + $0xa0] sm:$0xff]
  %v78 = vld [vmem:[%s1 + $0xa8] sm:$0xff]
  %v79 = vld [vmem:[%s1 + $0xb0] sm:$0xff]
  %v80 = vld [vmem:[%s1 + $0xb8] sm:$0xff]
  %v81 = vld [vmem:[%s1 + $0xc0] sm:$0xff]
  %v82 = vld [vmem:[%s1 + $0xc8] sm:$0xff]
  %v83 = vld [vmem:[%s1 + $0xd0] sm:$0xff]
  %v84 = vld [vmem:[%s1 + $0xd8] sm:$0xff]
  %v85 = vld [vmem:[%s1 + $0xe0] sm:$0xff]
  %v86 = vld [vmem:[%s1 + $0xe8] sm:$0xff]
  %v87 = vld [vmem:[%s1 + $0xf0] sm:$0xff]
  %v88 = vld [vmem:[%s1 + $0xf8] sm:$0xff]
  %v89 = vld [vmem:[%s1 + $0x100] sm:$0xff]
  %v90 = vld [vmem:[%s1 + $0x108] sm:$0xff]
  %v91 = vld [vmem:[%s1 + $0x110] sm:$0xff]
  %v92 = vld [vmem:[%s1 + $0x118] sm:$0xff]
  %v93 = vld [vmem:[%s1 + $0x120] sm:$0xff]
  %v94 = vld [vmem:[%s1 + $0x128] sm:$0xff]
  %v95 = vld [vmem:[%s1 + $0x130] sm:$0xff]
  %v96 = vld [vmem:[%s1 + $0x138] sm:$0xff]
  %v97 = vld [vmem:[%s1 + $0x140] sm:$0xff]
  %v98 = vld [vmem:[%s1 + $0x148] sm:$0xff]
  %v99 = vld [vmem:[%s1 + $0x150] sm:$0xff]
  %v100 = vld [vmem:[%s1 + $0x158] sm:$0xff]
  %v101 = vld [vmem:[%s1 + $0x160] sm:$0xff]
  %v102 = vld [vmem:[%s1 + $0x168] sm:$0xff]
  %v103 = vld [vmem:[%s1 + $0x170] sm:$0xff]
  %v104 = vld [vmem:[%s1 + $0x178] sm:$0xff]
  %v105 = vld [vmem:[%s1 + $0x180] sm:$0xff]
  %v106 = vld [vmem:[%s1 + $0x188] sm:$0xff]
  %v107 = vld [vmem:[%s1 + $0x190] sm:$0xff]
  %v108 = vld [vmem:[%s1 + $0x198] sm:$0x33]
  %v109 = vld [vmem:[%s1 + $0x1a0] sm:$0x33]
  %v110 = vld [vmem:[%s1 + $0x1a8] sm:$0x33]
  %v135 = vunpack.c.l.b16 %v33
  %v136 = vunpack.c.h.b16 %v33
  %v137 = vunpack.c.l.b16 %v34
  %v138 = vunpack.c.h.b16 %v34
  %v139 = vunpack.c.l.b16 %v35
  %v140 = vunpack.c.h.b16 %v35
  %v141 = vunpack.c.l.b16 %v36
  %v142 = vunpack.c.h.b16 %v36
  %v143 = vunpack.c.l.b16 %v37
  %v144 = vunpack.c.h.b16 %v37
  %v145 = vunpack.c.l.b16 %v38
  %v146 = vunpack.c.h.b16 %v38
  %v147 = vunpack.c.l.b16 %v39
  %v148 = vunpack.c.h.b16 %v39
  %v149 = vunpack.c.l.b16 %v40
  %v150 = vunpack.c.h.b16 %v40
  %v151 = vunpack.c.l.b16 %v41
  %v152 = vunpack.c.h.b16 %v41
  %v153 = vunpack.c.l.b16 %v42
  %v154 = vunpack.c.h.b16 %v42
  %v155 = vunpack.c.l.b16 %v43
  %v156 = vunpack.c.h.b16 %v43
  %v157 = vunpack.c.l.b16 %v44
  %v158 = vunpack.c.h.b16 %v44
  %v159 = vunpack.c.l.b16 %v45
  %v160 = vunpack.c.h.b16 %v45
  %v161 = vunpack.c.l.b16 %v46
  %v162 = vunpack.c.h.b16 %v46
  %v163 = vunpack.c.l.b16 %v47
  %v164 = vunpack.c.h.b16 %v47
  %v165 = vunpack.c.l.b16 %v48
  %v166 = vunpack.c.h.b16 %v48
  %v167 = vunpack.c.l.b16 %v49
  %v168 = vunpack.c.h.b16 %v49
  %v169 = vunpack.c.l.b16 %v50
  %v170 = vunpack.c.h.b16 %v50
  %v171 = vunpack.c.l.b16 %v51
  %v172 = vunpack.c.h.b16 %v51
  %v173 = vunpack.c.l.b16 %v52
  %v174 = vunpack.c.h.b16 %v52
  %v175 = vunpack.c.l.b16 %v53
  %v176 = vunpack.c.h.b16 %v53
  %v177 = vunpack.c.l.b16 %v54
  %v178 = vunpack.c.h.b16 %v54
  %v179 = vunpack.c.l.b16 %v55
  %v180 = vunpack.c.h.b16 %v55
  %v181 = vunpack.c.l.b16 %v56
  %v182 = vunpack.c.h.b16 %v56
  %v183 = vpack.c.b16 %v137, %v135
  %v184 = vpack.c.b16 %v138, %v136
  %v185 = vpack.c.b16 %v141, %v139
  %v186 = vpack.c.b16 %v142, %v140
  %v187 = vpack.c.b16 %v145, %v143
  %v188 = vpack.c.b16 %v146, %v144
  %v189 = vpack.c.b16 %v149, %v147
  %v190 = vpack.c.b16 %v150, %v148
  %v191 = vpack.c.b16 %v153, %v151
  %v192 = vpack.c.b16 %v154, %v152
  %v193 = vpack.c.b16 %v157, %v155
  %v194 = vpack.c.b16 %v158, %v156
  %v195 = vpack.c.b16 %v161, %v159
  %v196 = vpack.c.b16 %v162, %v160
  %v197 = vpack.c.b16 %v165, %v163
  %v198 = vpack.c.b16 %v166, %v164
  %v199 = vpack.c.b16 %v169, %v167
  %v200 = vpack.c.b16 %v170, %v168
  %v201 = vpack.c.b16 %v173, %v171
  %v202 = vpack.c.b16 %v174, %v172
  %v203 = vpack.c.b16 %v177, %v175
  %v204 = vpack.c.b16 %v178, %v176
  %v205 = vpack.c.b16 %v181, %v179
  %v206 = vpack.c.b16 %v182, %v180
  %v273 = vunpack.c.l.b16 %v57
  %v274 = vunpack.c.h.b16 %v57
  %v275 = vunpack.c.l.b16 %v58
  %v276 = vunpack.c.h.b16 %v58
  %v277 = vunpack.c.l.b16 %v59
  %v278 = vunpack.c.h.b16 %v59
  %v279 = vunpack.c.l.b16 %v60
  %v280 = vunpack.c.h.b16 %v60
  %v281 = vunpack.c.l.b16 %v61
  %v282 = vunpack.c.h.b16 %v61
  %v283 = vunpack.c.l.b16 %v62
  %v284 = vunpack.c.h.b16 %v62
  %v285 = vunpack.c.l.b16 %v63
  %v286 = vunpack.c.h.b16 %v63
  %v287 = vunpack.c.l.b16 %v64
  %v288 = vunpack.c.h.b16 %v64
  %v289 = vunpack.c.l.b16 %v65
  %v290 = vunpack.c.h.b16 %v65
  %v291 = vunpack.c.l.b16 %v66
  %v292 = vunpack.c.h.b16 %v66
  %v293 = vunpack.c.l.b16 %v67
  %v294 = vunpack.c.h.b16 %v67
  %v295 = vunpack.c.l.b16 %v68
  %v296 = vunpack.c.h.b16 %v68
  %v297 = vunpack.c.l.b16 %v69
  %v298 = vunpack.c.h.b16 %v69
  %v299 = vunpack.c.l.b16 %v70
  %v300 = vunpack.c.h.b16 %v70
  %v301 = vunpack.c.l.b16 %v71
  %v302 = vunpack.c.h.b16 %v71
  %v303 = vunpack.c.l.b16 %v72
  %v304 = vunpack.c.h.b16 %v72
  %v305 = vunpack.c.l.b16 %v73
  %v306 = vunpack.c.h.b16 %v73
  %v307 = vunpack.c.l.b16 %v74
  %v308 = vunpack.c.h.b16 %v74
  %v309 = vunpack.c.l.b16 %v75
  %v310 = vunpack.c.h.b16 %v75
  %v311 = vunpack.c.l.b16 %v76
  %v312 = vunpack.c.h.b16 %v76
  %v313 = vunpack.c.l.b16 %v77
  %v314 = vunpack.c.h.b16 %v77
  %v315 = vunpack.c.l.b16 %v78
  %v316 = vunpack.c.h.b16 %v78
  %v317 = vunpack.c.l.b16 %v79
  %v318 = vunpack.c.h.b16 %v79
  %v319 = vunpack.c.l.b16 %v80
  %v320 = vunpack.c.h.b16 %v80
  %v321 = vunpack.c.l.b16 %v81
  %v322 = vunpack.c.h.b16 %v81
  %v323 = vunpack.c.l.b16 %v82
  %v324 = vunpack.c.h.b16 %v82
  %v325 = vunpack.c.l.b16 %v83
  %v326 = vunpack.c.h.b16 %v83
  %v327 = vunpack.c.l.b16 %v84
  %v328 = vunpack.c.h.b16 %v84
  %v329 = vunpack.c.l.b16 %v85
  %v330 = vunpack.c.h.b16 %v85
  %v331 = vunpack.c.l.b16 %v86
  %v332 = vunpack.c.h.b16 %v86
  %v333 = vunpack.c.l.b16 %v87
  %v334 = vunpack.c.h.b16 %v87
  %v335 = vunpack.c.l.b16 %v88
  %v336 = vunpack.c.h.b16 %v88
  %v337 = vunpack.c.l.b16 %v89
  %v338 = vunpack.c.h.b16 %v89
  %v339 = vunpack.c.l.b16 %v90
  %v340 = vunpack.c.h.b16 %v90
  %v341 = vunpack.c.l.b16 %v91
  %v342 = vunpack.c.h.b16 %v91
  %v343 = vunpack.c.l.b16 %v92
  %v344 = vunpack.c.h.b16 %v92
  %v345 = vunpack.c.l.b16 %v93
  %v346 = vunpack.c.h.b16 %v93
  %v347 = vunpack.c.l.b16 %v94
  %v348 = vunpack.c.h.b16 %v94
  %v349 = vunpack.c.l.b16 %v95
  %v350 = vunpack.c.h.b16 %v95
  %v351 = vunpack.c.l.b16 %v96
  %v352 = vunpack.c.h.b16 %v96
  %v353 = vunpack.c.l.b16 %v97
  %v354 = vunpack.c.h.b16 %v97
  %v355 = vunpack.c.l.b16 %v98
  %v356 = vunpack.c.h.b16 %v98
  %v357 = vunpack.c.l.b16 %v99
  %v358 = vunpack.c.h.b16 %v99
  %v359 = vunpack.c.l.b16 %v100
  %v360 = vunpack.c.h.b16 %v100
  %v361 = vunpack.c.l.b16 %v101
  %v362 = vunpack.c.h.b16 %v101
  %v363 = vunpack.c.l.b16 %v102
  %v364 = vunpack.c.h.b16 %v102
  %v365 = vunpack.c.l.b16 %v103
  %v366 = vunpack.c.h.b16 %v103
  %v367 = vunpack.c.l.b16 %v104
  %v368 = vunpack.c.h.b16 %v104
  %v369 = vunpack.c.l.b16 %v105
  %v370 = vunpack.c.h.b16 %v105
  %v371 = vunpack.c.l.b16 %v106
  %v372 = vunpack.c.h.b16 %v106
  %v373 = vunpack.c.l.b16 %v107
  %v374 = vunpack.c.h.b16 %v107
  %v375 = vunpack.c.l.b16 %v108
  %v376 = vunpack.c.h.b16 %v108
  %v377 = vunpack.c.l.b16 %v109
  %v378 = vunpack.c.h.b16 %v109
  %v379 = vunpack.c.l.b16 %v110
  %v380 = vunpack.c.h.b16 %v110
  %v381 = vpack.c.b16 %v279, %v273
  %v382 = vpack.c.b16 %v280, %v274
  %v383 = vpack.c.b16 %v281, %v275
  %v384 = vpack.c.b16 %v282, %v276
  %v385 = vpack.c.b16 %v283, %v277
  %v386 = vpack.c.b16 %v284, %v278
  %v387 = vpack.c.b16 %v291, %v285
  %v388 = vpack.c.b16 %v292, %v286
  %v389 = vpack.c.b16 %v293, %v287
  %v390 = vpack.c.b16 %v294, %v288
  %v391 = vpack.c.b16 %v295, %v289
  %v392 = vpack.c.b16 %v296, %v290
  %v393 = vpack.c.b16 %v303, %v297
  %v394 = vpack.c.b16 %v304, %v298
  %v395 = vpack.c.b16 %v305, %v299
  %v396 = vpack.c.b16 %v306, %v300
  %v397 = vpack.c.b16 %v307, %v301
  %v398 = vpack.c.b16 %v308, %v302
  %v399 = vpack.c.b16 %v315, %v309
  %v400 = vpack.c.b16 %v316, %v310
  %v401 = vpack.c.b16 %v317, %v311
  %v402 = vpack.c.b16 %v318, %v312
  %v403 = vpack.c.b16 %v319, %v313
  %v404 = vpack.c.b16 %v320, %v314
  %v405 = vpack.c.b16 %v327, %v321
  %v406 = vpack.c.b16 %v328, %v322
  %v407 = vpack.c.b16 %v329, %v323
  %v408 = vpack.c.b16 %v330, %v324
  %v409 = vpack.c.b16 %v331, %v325
  %v410 = vpack.c.b16 %v332, %v326
  %v411 = vpack.c.b16 %v339, %v333
  %v412 = vpack.c.b16 %v340, %v334
  %v413 = vpack.c.b16 %v341, %v335
  %v414 = vpack.c.b16 %v342, %v336
  %v415 = vpack.c.b16 %v343, %v337
  %v416 = vpack.c.b16 %v344, %v338
  %v417 = vpack.c.b16 %v351, %v345
  %v418 = vpack.c.b16 %v352, %v346
  %v419 = vpack.c.b16 %v353, %v347
  %v420 = vpack.c.b16 %v354, %v348
  %v421 = vpack.c.b16 %v355, %v349
  %v422 = vpack.c.b16 %v356, %v350
  %v423 = vpack.c.b16 %v363, %v357
  %v424 = vpack.c.b16 %v364, %v358
  %v425 = vpack.c.b16 %v365, %v359
  %v426 = vpack.c.b16 %v366, %v360
  %v427 = vpack.c.b16 %v367, %v361
  %v428 = vpack.c.b16 %v368, %v362
  %v429 = vpack.c.b16 %v375, %v369
  %v430 = vpack.c.b16 %v376, %v370
  %v431 = vpack.c.b16 %v377, %v371
  %v432 = vpack.c.b16 %v378, %v372
  %v433 = vpack.c.b16 %v379, %v373
  %v434 = vpack.c.b16 %v380, %v374
  %vm483 = vcmask 97280
  %v485 = vsel %vm483, %v184, 0
  %v488 = vsel %vm483, %v186, 0
  %v491 = vsel %vm483, %v188, 0
  %v494 = vsel %vm483, %v190, 0
  %v497 = vsel %vm483, %v192, 0
  %v500 = vsel %vm483, %v194, 0
  %v503 = vsel %vm483, %v196, 0
  %v506 = vsel %vm483, %v198, 0
  %v509 = vsel %vm483, %v200, 0
  %v512 = vsel %vm483, %v202, 0
  %v515 = vsel %vm483, %v204, 0
  %v518 = vsel %vm483, %v206, 0
  %vm520 = vcmask 1045504
  %v522 = vsel %vm520, %v429, 0
  %v525 = vsel %vm520, %v430, 0
  %v528 = vsel %vm520, %v431, 0
  %v531 = vsel %vm520, %v432, 0
  %v534 = vsel %vm520, %v433, 0
  %v537 = vsel %vm520, %v434, 0
  %539 = vmatprep.subr.bf16.mxu0 %v424
  %540 = vmatpush1.bf16.msra.mxu0 %v423
  %541 = vmatprep.subr.bf16.mxu0 %v418
  %542 = vmatpush1.bf16.msra.mxu0 %v417
  %543 = vmatprep.subr.bf16.mxu0 %v412
  %544 = vmatpush1.bf16.msra.mxu0 %v411
  %545 = vmatprep.subr.bf16.mxu0 %v406
  %546 = vmatpush1.bf16.msra.mxu0 %v405
  %547 = vmatprep.subr.bf16.mxu0 %v400
  %548 = vmatpush1.bf16.msra.mxu0 %v399
  %549 = vmatprep.subr.bf16.mxu0 %v394
  %550 = vmatpush1.bf16.msra.mxu0 %v393
  %551 = vmatprep.subr.bf16.mxu0 %v388
  %552 = vmatpush1.bf16.msra.mxu0 %v387
  %553 = vmatprep.subr.bf16.mxu0 %v382
  %554 = vmatpush1.bf16.msra.mxu0 %v381
  %555 = vmatprep.subr.bf16.mxu0 0
  %556 = vmatpush2.bf16.msra.mxu0 0
  %557 = vmatprep.subr.bf16.mxu0 0
  %558 = vmatpush2.bf16.msra.mxu0 0
  %559 = vmatprep.subr.bf16.mxu0 0
  %560 = vmatpush2.bf16.msra.mxu0 0
  %561 = vmatprep.subr.bf16.mxu0 0
  %562 = vmatpush2.bf16.msra.mxu0 0
  %563 = vmatprep.subr.bf16.mxu0 0
  %564 = vmatpush2.bf16.msra.mxu0 0
  %565 = vmatprep.subr.bf16.mxu0 0
  %566 = vmatpush2.bf16.msra.mxu0 0
  %567 = vmatprep.subr.bf16.mxu0 0
  %568 = vmatpush2.bf16.msra.mxu0 0
  %569 = vmatprep.subr.bf16.mxu0 %v525
  %570 = vmatpush2.bf16.msra.mxu0 %v522
  %571 = vmatprep.mubr.bf16.mxu0 %v485
  %572 = vmatmul.mubr.bf16.gmra.mxu0 %v183
  %v573 = vpop.f32.mrf.mxu0
  %v574 = vadd.f32 0.0, %v573
  %v575 = vpop.f32.mrf.mxu0
  %v576 = vadd.f32 0.0, %v575
  %v577 = vpop.f32.mrf.mxu0
  %v578 = vadd.f32 0.0, %v577
  %v579 = vpop.f32.mrf.mxu0
  %v580 = vadd.f32 0.0, %v579
  %581 = vmatprep.mubr.bf16.mxu0 %v488
  %582 = vmatmul.mubr.bf16.gmra.mxu0 %v185
  %v583 = vpop.f32.mrf.mxu0
  %v584 = vadd.f32 0.0, %v583
  %v585 = vpop.f32.mrf.mxu0
  %v586 = vadd.f32 0.0, %v585
  %v587 = vpop.f32.mrf.mxu0
  %v588 = vadd.f32 0.0, %v587
  %v589 = vpop.f32.mrf.mxu0
  %v590 = vadd.f32 0.0, %v589
  %591 = vmatprep.mubr.bf16.mxu0 %v491
  %592 = vmatmul.mubr.bf16.gmra.mxu0 %v187
  %v593 = vpop.f32.mrf.mxu0
  %v594 = vadd.f32 0.0, %v593
  %v595 = vpop.f32.mrf.mxu0
  %v596 = vadd.f32 0.0, %v595
  %v597 = vpop.f32.mrf.mxu0
  %v598 = vadd.f32 0.0, %v597
  %v599 = vpop.f32.mrf.mxu0
  %v600 = vadd.f32 0.0, %v599
  %601 = vmatprep.mubr.bf16.mxu0 %v494
  %602 = vmatmul.mubr.bf16.gmra.mxu0 %v189
  %v603 = vpop.f32.mrf.mxu0
  %v604 = vadd.f32 0.0, %v603
  %v605 = vpop.f32.mrf.mxu0
  %v606 = vadd.f32 0.0, %v605
  %v607 = vpop.f32.mrf.mxu0
  %v608 = vadd.f32 0.0, %v607
  %v609 = vpop.f32.mrf.mxu0
  %v610 = vadd.f32 0.0, %v609
  %611 = vmatprep.mubr.bf16.mxu0 %v497
  %612 = vmatmul.mubr.bf16.gmra.mxu0 %v191
  %v613 = vpop.f32.mrf.mxu0
  %v614 = vadd.f32 0.0, %v613
  %v615 = vpop.f32.mrf.mxu0
  %v616 = vadd.f32 0.0, %v615
  %v617 = vpop.f32.mrf.mxu0
  %v618 = vadd.f32 0.0, %v617
  %v619 = vpop.f32.mrf.mxu0
  %v620 = vadd.f32 0.0, %v619
  %621 = vmatprep.mubr.bf16.mxu0 %v500
  %622 = vmatmul.mubr.bf16.gmra.mxu0 %v193
  %v623 = vpop.f32.mrf.mxu0
  %v624 = vadd.f32 0.0, %v623
  %v625 = vpop.f32.mrf.mxu0
  %v626 = vadd.f32 0.0, %v625
  %v627 = vpop.f32.mrf.mxu0
  %v628 = vadd.f32 0.0, %v627
  %v629 = vpop.f32.mrf.mxu0
  %v630 = vadd.f32 0.0, %v629
  %631 = vmatprep.mubr.bf16.mxu0 %v503
  %632 = vmatmul.mubr.bf16.gmra.mxu0 %v195
  %v633 = vpop.f32.mrf.mxu0
  %v634 = vadd.f32 0.0, %v633
  %v635 = vpop.f32.mrf.mxu0
  %v636 = vadd.f32 0.0, %v635
  %v637 = vpop.f32.mrf.mxu0
  %v638 = vadd.f32 0.0, %v637
  %v639 = vpop.f32.mrf.mxu0
  %v640 = vadd.f32 0.0, %v639
  %641 = vmatprep.mubr.bf16.mxu0 %v506
  %642 = vmatmul.mubr.bf16.gmra.mxu0 %v197
  %v643 = vpop.f32.mrf.mxu0
  %v644 = vadd.f32 0.0, %v643
  %v645 = vpop.f32.mrf.mxu0
  %v646 = vadd.f32 0.0, %v645
  %v647 = vpop.f32.mrf.mxu0
  %v648 = vadd.f32 0.0, %v647
  %v649 = vpop.f32.mrf.mxu0
  %v650 = vadd.f32 0.0, %v649
  %651 = vmatprep.mubr.bf16.mxu0 %v509
  %652 = vmatmul.mubr.bf16.gmra.mxu0 %v199
  %v653 = vpop.f32.mrf.mxu0
  %v654 = vadd.f32 0.0, %v653
  %v655 = vpop.f32.mrf.mxu0
  %v656 = vadd.f32 0.0, %v655
  %v657 = vpop.f32.mrf.mxu0
  %v658 = vadd.f32 0.0, %v657
  %v659 = vpop.f32.mrf.mxu0
  %v660 = vadd.f32 0.0, %v659
  %661 = vmatprep.mubr.bf16.mxu0 %v512
  %662 = vmatmul.mubr.bf16.gmra.mxu0 %v201
  %v663 = vpop.f32.mrf.mxu0
  %v664 = vadd.f32 0.0, %v663
  %v665 = vpop.f32.mrf.mxu0
  %v666 = vadd.f32 0.0, %v665
  %v667 = vpop.f32.mrf.mxu0
  %v668 = vadd.f32 0.0, %v667
  %v669 = vpop.f32.mrf.mxu0
  %v670 = vadd.f32 0.0, %v669
  %671 = vmatprep.mubr.bf16.mxu0 %v515
  %672 = vmatmul.mubr.bf16.gmra.mxu0 %v203
  %v673 = vpop.f32.mrf.mxu0
  %v674 = vadd.f32 0.0, %v673
  %v675 = vpop.f32.mrf.mxu0
  %v676 = vadd.f32 0.0, %v675
  %v677 = vpop.f32.mrf.mxu0
  %v678 = vadd.f32 0.0, %v677
  %v679 = vpop.f32.mrf.mxu0
  %v680 = vadd.f32 0.0, %v679
  %681 = vmatprep.mubr.bf16.mxu0 %v518
  %682 = vmatmul.mubr.bf16.gmra.mxu0 %v205
  %v683 = vpop.f32.mrf.mxu0
  %v684 = vadd.f32 0.0, %v683
  %v685 = vpop.f32.mrf.mxu0
  %v686 = vadd.f32 0.0, %v685
  %v687 = vpop.f32.mrf.mxu0
  %v688 = vadd.f32 0.0, %v687
  %v689 = vpop.f32.mrf.mxu0
  %v690 = vadd.f32 0.0, %v689
  %691 = vdwg.mxu0
  %692 = vmatprep.subr.bf16.mxu0 %v426
  %693 = vmatpush1.bf16.msra.mxu0 %v425
  %694 = vmatprep.subr.bf16.mxu0 %v420
  %695 = vmatpush1.bf16.msra.mxu0 %v419
  %696 = vmatprep.subr.bf16.mxu0 %v414
  %697 = vmatpush1.bf16.msra.mxu0 %v413
  %698 = vmatprep.subr.bf16.mxu0 %v408
  %699 = vmatpush1.bf16.msra.mxu0 %v407
  %700 = vmatprep.subr.bf16.mxu0 %v402
  %701 = vmatpush1.bf16.msra.mxu0 %v401
  %702 = vmatprep.subr.bf16.mxu0 %v396
  %703 = vmatpush1.bf16.msra.mxu0 %v395
  %704 = vmatprep.subr.bf16.mxu0 %v390
  %705 = vmatpush1.bf16.msra.mxu0 %v389
  %706 = vmatprep.subr.bf16.mxu0 %v384
  %707 = vmatpush1.bf16.msra.mxu0 %v383
  %708 = vmatprep.subr.bf16.mxu0 0
  %709 = vmatpush2.bf16.msra.mxu0 0
  %710 = vmatprep.subr.bf16.mxu0 0
  %711 = vmatpush2.bf16.msra.mxu0 0
  %712 = vmatprep.subr.bf16.mxu0 0
  %713 = vmatpush2.bf16.msra.mxu0 0
  %714 = vmatprep.subr.bf16.mxu0 0
  %715 = vmatpush2.bf16.msra.mxu0 0
  %716 = vmatprep.subr.bf16.mxu0 0
  %717 = vmatpush2.bf16.msra.mxu0 0
  %718 = vmatprep.subr.bf16.mxu0 0
  %719 = vmatpush2.bf16.msra.mxu0 0
  %720 = vmatprep.subr.bf16.mxu0 0
  %721 = vmatpush2.bf16.msra.mxu0 0
  %722 = vmatprep.subr.bf16.mxu0 %v531
  %723 = vmatpush2.bf16.msra.mxu0 %v528
  %724 = vmatprep.mubr.bf16.mxu0 %v485
  %725 = vmatmul.mubr.bf16.gmra.mxu0 %v183
  %v726 = vpop.f32.mrf.mxu0
  %v727 = vadd.f32 0.0, %v726
  %v728 = vpop.f32.mrf.mxu0
  %v729 = vadd.f32 0.0, %v728
  %v730 = vpop.f32.mrf.mxu0
  %v731 = vadd.f32 0.0, %v730
  %v732 = vpop.f32.mrf.mxu0
  %v733 = vadd.f32 0.0, %v732
  %734 = vmatprep.mubr.bf16.mxu0 %v488
  %735 = vmatmul.mubr.bf16.gmra.mxu0 %v185
  %v736 = vpop.f32.mrf.mxu0
  %v737 = vadd.f32 0.0, %v736
  %v738 = vpop.f32.mrf.mxu0
  %v739 = vadd.f32 0.0, %v738
  %v740 = vpop.f32.mrf.mxu0
  %v741 = vadd.f32 0.0, %v740
  %v742 = vpop.f32.mrf.mxu0
  %v743 = vadd.f32 0.0, %v742
  %744 = vmatprep.mubr.bf16.mxu0 %v491
  %745 = vmatmul.mubr.bf16.gmra.mxu0 %v187
  %v746 = vpop.f32.mrf.mxu0
  %v747 = vadd.f32 0.0, %v746
  %v748 = vpop.f32.mrf.mxu0
  %v749 = vadd.f32 0.0, %v748
  %v750 = vpop.f32.mrf.mxu0
  %v751 = vadd.f32 0.0, %v750
  %v752 = vpop.f32.mrf.mxu0
  %v753 = vadd.f32 0.0, %v752
  %754 = vmatprep.mubr.bf16.mxu0 %v494
  %755 = vmatmul.mubr.bf16.gmra.mxu0 %v189
  %v756 = vpop.f32.mrf.mxu0
  %v757 = vadd.f32 0.0, %v756
  %v758 = vpop.f32.mrf.mxu0
  %v759 = vadd.f32 0.0, %v758
  %v760 = vpop.f32.mrf.mxu0
  %v761 = vadd.f32 0.0, %v760
  %v762 = vpop.f32.mrf.mxu0
  %v763 = vadd.f32 0.0, %v762
  %764 = vmatprep.mubr.bf16.mxu0 %v497
  %765 = vmatmul.mubr.bf16.gmra.mxu0 %v191
  %v766 = vpop.f32.mrf.mxu0
  %v767 = vadd.f32 0.0, %v766
  %v768 = vpop.f32.mrf.mxu0
  %v769 = vadd.f32 0.0, %v768
  %v770 = vpop.f32.mrf.mxu0
  %v771 = vadd.f32 0.0, %v770
  %v772 = vpop.f32.mrf.mxu0
  %v773 = vadd.f32 0.0, %v772
  %774 = vmatprep.mubr.bf16.mxu0 %v500
  %775 = vmatmul.mubr.bf16.gmra.mxu0 %v193
  %v776 = vpop.f32.mrf.mxu0
  %v777 = vadd.f32 0.0, %v776
  %v778 = vpop.f32.mrf.mxu0
  %v779 = vadd.f32 0.0, %v778
  %v780 = vpop.f32.mrf.mxu0
  %v781 = vadd.f32 0.0, %v780
  %v782 = vpop.f32.mrf.mxu0
  %v783 = vadd.f32 0.0, %v782
  %784 = vmatprep.mubr.bf16.mxu0 %v503
  %785 = vmatmul.mubr.bf16.gmra.mxu0 %v195
  %v786 = vpop.f32.mrf.mxu0
  %v787 = vadd.f32 0.0, %v786
  %v788 = vpop.f32.mrf.mxu0
  %v789 = vadd.f32 0.0, %v788
  %v790 = vpop.f32.mrf.mxu0
  %v791 = vadd.f32 0.0, %v790
  %v792 = vpop.f32.mrf.mxu0
  %v793 = vadd.f32 0.0, %v792
  %794 = vmatprep.mubr.bf16.mxu0 %v506
  %795 = vmatmul.mubr.bf16.gmra.mxu0 %v197
  %v796 = vpop.f32.mrf.mxu0
  %v797 = vadd.f32 0.0, %v796
  %v798 = vpop.f32.mrf.mxu0
  %v799 = vadd.f32 0.0, %v798
  %v800 = vpop.f32.mrf.mxu0
  %v801 = vadd.f32 0.0, %v800
  %v802 = vpop.f32.mrf.mxu0
  %v803 = vadd.f32 0.0, %v802
  %804 = vmatprep.mubr.bf16.mxu0 %v509
  %805 = vmatmul.mubr.bf16.gmra.mxu0 %v199
  %v806 = vpop.f32.mrf.mxu0
  %v807 = vadd.f32 0.0, %v806
  %v808 = vpop.f32.mrf.mxu0
  %v809 = vadd.f32 0.0, %v808
  %v810 = vpop.f32.mrf.mxu0
  %v811 = vadd.f32 0.0, %v810
  %v812 = vpop.f32.mrf.mxu0
  %v813 = vadd.f32 0.0, %v812
  %814 = vmatprep.mubr.bf16.mxu0 %v512
  %815 = vmatmul.mubr.bf16.gmra.mxu0 %v201
  %v816 = vpop.f32.mrf.mxu0
  %v817 = vadd.f32 0.0, %v816
  %v818 = vpop.f32.mrf.mxu0
  %v819 = vadd.f32 0.0, %v818
  %v820 = vpop.f32.mrf.mxu0
  %v821 = vadd.f32 0.0, %v820
  %v822 = vpop.f32.mrf.mxu0
  %v823 = vadd.f32 0.0, %v822
  %824 = vmatprep.mubr.bf16.mxu0 %v515
  %825 = vmatmul.mubr.bf16.gmra.mxu0 %v203
  %v826 = vpop.f32.mrf.mxu0
  %v827 = vadd.f32 0.0, %v826
  %v828 = vpop.f32.mrf.mxu0
  %v829 = vadd.f32 0.0, %v828
  %v830 = vpop.f32.mrf.mxu0
  %v831 = vadd.f32 0.0, %v830
  %v832 = vpop.f32.mrf.mxu0
  %v833 = vadd.f32 0.0, %v832
  %834 = vmatprep.mubr.bf16.mxu0 %v518
  %835 = vmatmul.mubr.bf16.gmra.mxu0 %v205
  %v836 = vpop.f32.mrf.mxu0
  %v837 = vadd.f32 0.0, %v836
  %v838 = vpop.f32.mrf.mxu0
  %v839 = vadd.f32 0.0, %v838
  %v840 = vpop.f32.mrf.mxu0
  %v841 = vadd.f32 0.0, %v840
  %v842 = vpop.f32.mrf.mxu0
  %v843 = vadd.f32 0.0, %v842
  %844 = vdwg.mxu0
  %845 = vmatprep.subr.bf16.mxu0 %v428
  %846 = vmatpush1.bf16.msra.mxu0 %v427
  %847 = vmatprep.subr.bf16.mxu0 %v422
  %848 = vmatpush1.bf16.msra.mxu0 %v421
  %849 = vmatprep.subr.bf16.mxu0 %v416
  %850 = vmatpush1.bf16.msra.mxu0 %v415
  %851 = vmatprep.subr.bf16.mxu0 %v410
  %852 = vmatpush1.bf16.msra.mxu0 %v409
  %853 = vmatprep.subr.bf16.mxu0 %v404
  %854 = vmatpush1.bf16.msra.mxu0 %v403
  %855 = vmatprep.subr.bf16.mxu0 %v398
  %856 = vmatpush1.bf16.msra.mxu0 %v397
  %857 = vmatprep.subr.bf16.mxu0 %v392
  %858 = vmatpush1.bf16.msra.mxu0 %v391
  %859 = vmatprep.subr.bf16.mxu0 %v386
  %860 = vmatpush1.bf16.msra.mxu0 %v385
  %861 = vmatprep.subr.bf16.mxu0 0
  %862 = vmatpush2.bf16.msra.mxu0 0
  %863 = vmatprep.subr.bf16.mxu0 0
  %864 = vmatpush2.bf16.msra.mxu0 0
  %865 = vmatprep.subr.bf16.mxu0 0
  %866 = vmatpush2.bf16.msra.mxu0 0
  %867 = vmatprep.subr.bf16.mxu0 0
  %868 = vmatpush2.bf16.msra.mxu0 0
  %869 = vmatprep.subr.bf16.mxu0 0
  %870 = vmatpush2.bf16.msra.mxu0 0
  %871 = vmatprep.subr.bf16.mxu0 0
  %872 = vmatpush2.bf16.msra.mxu0 0
  %873 = vmatprep.subr.bf16.mxu0 0
  %874 = vmatpush2.bf16.msra.mxu0 0
  %875 = vmatprep.subr.bf16.mxu0 %v537
  %876 = vmatpush2.bf16.msra.mxu0 %v534
  %877 = vmatprep.mubr.bf16.mxu0 %v485
  %878 = vmatmul.mubr.bf16.gmra.mxu0 %v183
  %v879 = vpop.f32.mrf.mxu0
  %v880 = vadd.f32 0.0, %v879
  %v881 = vpop.f32.mrf.mxu0
  %v882 = vadd.f32 0.0, %v881
  %v883 = vpop.f32.mrf.mxu0
  %v884 = vadd.f32 0.0, %v883
  %v885 = vpop.f32.mrf.mxu0
  %v886 = vadd.f32 0.0, %v885
  %887 = vmatprep.mubr.bf16.mxu0 %v488
  %888 = vmatmul.mubr.bf16.gmra.mxu0 %v185
  %v889 = vpop.f32.mrf.mxu0
  %v890 = vadd.f32 0.0, %v889
  %v891 = vpop.f32.mrf.mxu0
  %v892 = vadd.f32 0.0, %v891
  %v893 = vpop.f32.mrf.mxu0
  %v894 = vadd.f32 0.0, %v893
  %v895 = vpop.f32.mrf.mxu0
  %v896 = vadd.f32 0.0, %v895
  %897 = vmatprep.mubr.bf16.mxu0 %v491
  %898 = vmatmul.mubr.bf16.gmra.mxu0 %v187
  %v899 = vpop.f32.mrf.mxu0
  %v900 = vadd.f32 0.0, %v899
  %v901 = vpop.f32.mrf.mxu0
  %v902 = vadd.f32 0.0, %v901
  %v903 = vpop.f32.mrf.mxu0
  %v904 = vadd.f32 0.0, %v903
  %v905 = vpop.f32.mrf.mxu0
  %v906 = vadd.f32 0.0, %v905
  %907 = vmatprep.mubr.bf16.mxu0 %v494
  %908 = vmatmul.mubr.bf16.gmra.mxu0 %v189
  %v909 = vpop.f32.mrf.mxu0
  %v910 = vadd.f32 0.0, %v909
  %v911 = vpop.f32.mrf.mxu0
  %v912 = vadd.f32 0.0, %v911
  %v913 = vpop.f32.mrf.mxu0
  %v914 = vadd.f32 0.0, %v913
  %v915 = vpop.f32.mrf.mxu0
  %v916 = vadd.f32 0.0, %v915
  %917 = vmatprep.mubr.bf16.mxu0 %v497
  %918 = vmatmul.mubr.bf16.gmra.mxu0 %v191
  %v919 = vpop.f32.mrf.mxu0
  %v920 = vadd.f32 0.0, %v919
  %v921 = vpop.f32.mrf.mxu0
  %v922 = vadd.f32 0.0, %v921
  %v923 = vpop.f32.mrf.mxu0
  %v924 = vadd.f32 0.0, %v923
  %v925 = vpop.f32.mrf.mxu0
  %v926 = vadd.f32 0.0, %v925
  %927 = vmatprep.mubr.bf16.mxu0 %v500
  %928 = vmatmul.mubr.bf16.gmra.mxu0 %v193
  %v929 = vpop.f32.mrf.mxu0
  %v930 = vadd.f32 0.0, %v929
  %v931 = vpop.f32.mrf.mxu0
  %v932 = vadd.f32 0.0, %v931
  %v933 = vpop.f32.mrf.mxu0
  %v934 = vadd.f32 0.0, %v933
  %v935 = vpop.f32.mrf.mxu0
  %v936 = vadd.f32 0.0, %v935
  %937 = vmatprep.mubr.bf16.mxu0 %v503
  %938 = vmatmul.mubr.bf16.gmra.mxu0 %v195
  %v939 = vpop.f32.mrf.mxu0
  %v940 = vadd.f32 0.0, %v939
  %v941 = vpop.f32.mrf.mxu0
  %v942 = vadd.f32 0.0, %v941
  %v943 = vpop.f32.mrf.mxu0
  %v944 = vadd.f32 0.0, %v943
  %v945 = vpop.f32.mrf.mxu0
  %v946 = vadd.f32 0.0, %v945
  %947 = vmatprep.mubr.bf16.mxu0 %v506
  %948 = vmatmul.mubr.bf16.gmra.mxu0 %v197
  %v949 = vpop.f32.mrf.mxu0
  %v950 = vadd.f32 0.0, %v949
  %v951 = vpop.f32.mrf.mxu0
  %v952 = vadd.f32 0.0, %v951
  %v953 = vpop.f32.mrf.mxu0
  %v954 = vadd.f32 0.0, %v953
  %v955 = vpop.f32.mrf.mxu0
  %v956 = vadd.f32 0.0, %v955
  %957 = vmatprep.mubr.bf16.mxu0 %v509
  %958 = vmatmul.mubr.bf16.gmra.mxu0 %v199
  %v959 = vpop.f32.mrf.mxu0
  %v960 = vadd.f32 0.0, %v959
  %v961 = vpop.f32.mrf.mxu0
  %v962 = vadd.f32 0.0, %v961
  %v963 = vpop.f32.mrf.mxu0
  %v964 = vadd.f32 0.0, %v963
  %v965 = vpop.f32.mrf.mxu0
  %v966 = vadd.f32 0.0, %v965
  %967 = vmatprep.mubr.bf16.mxu0 %v512
  %968 = vmatmul.mubr.bf16.gmra.mxu0 %v201
  %v969 = vpop.f32.mrf.mxu0
  %v970 = vadd.f32 0.0, %v969
  %v971 = vpop.f32.mrf.mxu0
  %v972 = vadd.f32 0.0, %v971
  %v973 = vpop.f32.mrf.mxu0
  %v974 = vadd.f32 0.0, %v973
  %v975 = vpop.f32.mrf.mxu0
  %v976 = vadd.f32 0.0, %v975
  %977 = vmatprep.mubr.bf16.mxu0 %v515
  %978 = vmatmul.mubr.bf16.gmra.mxu0 %v203
  %v979 = vpop.f32.mrf.mxu0
  %v980 = vadd.f32 0.0, %v979
  %v981 = vpop.f32.mrf.mxu0
  %v982 = vadd.f32 0.0, %v981
  %v983 = vpop.f32.mrf.mxu0
  %v984 = vadd.f32 0.0, %v983
  %v985 = vpop.f32.mrf.mxu0
  %v986 = vadd.f32 0.0, %v985
  %987 = vmatprep.mubr.bf16.mxu0 %v518
  %988 = vmatmul.mubr.bf16.gmra.mxu0 %v205
  %v989 = vpop.f32.mrf.mxu0
  %v990 = vadd.f32 0.0, %v989
  %v991 = vpop.f32.mrf.mxu0
  %v992 = vadd.f32 0.0, %v991
  %v993 = vpop.f32.mrf.mxu0
  %v994 = vadd.f32 0.0, %v993
  %v995 = vpop.f32.mrf.mxu0
  %v996 = vadd.f32 0.0, %v995
  %997 = vdwg.mxu0
  %v998 = vmax.f32 %v574, %v727
  %v999 = vmax.f32 %v576, %v729
  %v1000 = vmax.f32 %v578, %v731
  %v1001 = vmax.f32 %v580, %v733
  %v1002 = vmax.f32 %v584, %v737
  %v1003 = vmax.f32 %v586, %v739
  %v1004 = vmax.f32 %v588, %v741
  %v1005 = vmax.f32 %v590, %v743
  %v1006 = vmax.f32 %v594, %v747
  %v1007 = vmax.f32 %v596, %v749
  %v1008 = vmax.f32 %v598, %v751
  %v1009 = vmax.f32 %v600, %v753
  %v1010 = vmax.f32 %v604, %v757
  %v1011 = vmax.f32 %v606, %v759
  %v1012 = vmax.f32 %v608, %v761
  %v1013 = vmax.f32 %v610, %v763
  %v1014 = vmax.f32 %v614, %v767
  %v1015 = vmax.f32 %v616, %v769
  %v1016 = vmax.f32 %v618, %v771
  %v1017 = vmax.f32 %v620, %v773
  %v1018 = vmax.f32 %v624, %v777
  %v1019 = vmax.f32 %v626, %v779
  %v1020 = vmax.f32 %v628, %v781
  %v1021 = vmax.f32 %v630, %v783
  %v1022 = vmax.f32 %v634, %v787
  %v1023 = vmax.f32 %v636, %v789
  %v1024 = vmax.f32 %v638, %v791
  %v1025 = vmax.f32 %v640, %v793
  %v1026 = vmax.f32 %v644, %v797
  %v1027 = vmax.f32 %v646, %v799
  %v1028 = vmax.f32 %v648, %v801
  %v1029 = vmax.f32 %v650, %v803
  %v1030 = vmax.f32 %v654, %v807
  %v1031 = vmax.f32 %v656, %v809
  %v1032 = vmax.f32 %v658, %v811
  %v1033 = vmax.f32 %v660, %v813
  %v1034 = vmax.f32 %v664, %v817
  %v1035 = vmax.f32 %v666, %v819
  %v1036 = vmax.f32 %v668, %v821
  %v1037 = vmax.f32 %v670, %v823
  %v1038 = vmax.f32 %v674, %v827
  %v1039 = vmax.f32 %v676, %v829
  %v1040 = vmax.f32 %v678, %v831
  %v1041 = vmax.f32 %v680, %v833
  %v1042 = vmax.f32 %v684, %v837
  %v1043 = vmax.f32 %v686, %v839
  %v1044 = vmax.f32 %v688, %v841
  %v1045 = vmax.f32 %v690, %v843
  %v1046 = vmax.f32 %v998, %v880
  %v1047 = vmax.f32 %v999, %v882
  %v1048 = vmax.f32 %v1000, %v884
  %v1049 = vmax.f32 %v1001, %v886
  %v1050 = vmax.f32 %v1002, %v890
  %v1051 = vmax.f32 %v1003, %v892
  %v1052 = vmax.f32 %v1004, %v894
  %v1053 = vmax.f32 %v1005, %v896
  %v1054 = vmax.f32 %v1006, %v900
  %v1055 = vmax.f32 %v1007, %v902
  %v1056 = vmax.f32 %v1008, %v904
  %v1057 = vmax.f32 %v1009, %v906
  %v1058 = vmax.f32 %v1010, %v910
  %v1059 = vmax.f32 %v1011, %v912
  %v1060 = vmax.f32 %v1012, %v914
  %v1061 = vmax.f32 %v1013, %v916
  %v1062 = vmax.f32 %v1014, %v920
  %v1063 = vmax.f32 %v1015, %v922
  %v1064 = vmax.f32 %v1016, %v924
  %v1065 = vmax.f32 %v1017, %v926
  %v1066 = vmax.f32 %v1018, %v930
  %v1067 = vmax.f32 %v1019, %v932
  %v1068 = vmax.f32 %v1020, %v934
  %v1069 = vmax.f32 %v1021, %v936
  %v1070 = vmax.f32 %v1022, %v940
  %v1071 = vmax.f32 %v1023, %v942
  %v1072 = vmax.f32 %v1024, %v944
  %v1073 = vmax.f32 %v1025, %v946
  %v1074 = vmax.f32 %v1026, %v950
  %v1075 = vmax.f32 %v1027, %v952
  %v1076 = vmax.f32 %v1028, %v954
  %v1077 = vmax.f32 %v1029, %v956
  %v1078 = vmax.f32 %v1030, %v960
  %v1079 = vmax.f32 %v1031, %v962
  %v1080 = vmax.f32 %v1032, %v964
  %v1081 = vmax.f32 %v1033, %v966
  %v1082 = vmax.f32 %v1034, %v970
  %v1083 = vmax.f32 %v1035, %v972
  %v1084 = vmax.f32 %v1036, %v974
  %v1085 = vmax.f32 %v1037, %v976
  %v1086 = vmax.f32 %v1038, %v980
  %v1087 = vmax.f32 %v1039, %v982
  %v1088 = vmax.f32 %v1040, %v984
  %v1089 = vmax.f32 %v1041, %v986
  %v1090 = vmax.f32 %v1042, %v990
  %v1091 = vmax.f32 %v1043, %v992
  %v1092 = vmax.f32 %v1044, %v994
  %v1093 = vmax.f32 %v1045, %v996
  %v1094 = vmax.f32 %v1046, %v1048
  %v1095 = vmax.f32 %v1047, %v1049
  %v1096 = vmax.f32 %v1052, %v1054
  %v1097 = vmax.f32 %v1053, %v1055
  %v1098 = vmax.f32 %v1058, %v1060
  %v1099 = vmax.f32 %v1059, %v1061
  %v1100 = vmax.f32 %v1064, %v1066
  %v1101 = vmax.f32 %v1065, %v1067
  %v1102 = vmax.f32 %v1070, %v1072
  %v1103 = vmax.f32 %v1071, %v1073
  %v1104 = vmax.f32 %v1076, %v1078
  %v1105 = vmax.f32 %v1077, %v1079
  %v1106 = vmax.f32 %v1082, %v1084
  %v1107 = vmax.f32 %v1083, %v1085
  %v1108 = vmax.f32 %v1088, %v1090
  %v1109 = vmax.f32 %v1089, %v1091
  %v1110 = vmax.f32 %v1094, %v1050
  %v1111 = vmax.f32 %v1095, %v1051
  %v1112 = vmax.f32 %v1096, %v1056
  %v1113 = vmax.f32 %v1097, %v1057
  %v1114 = vmax.f32 %v1098, %v1062
  %v1115 = vmax.f32 %v1099, %v1063
  %v1116 = vmax.f32 %v1100, %v1068
  %v1117 = vmax.f32 %v1101, %v1069
  %v1118 = vmax.f32 %v1102, %v1074
  %v1119 = vmax.f32 %v1103, %v1075
  %v1120 = vmax.f32 %v1104, %v1080
  %v1121 = vmax.f32 %v1105, %v1081
  %v1122 = vmax.f32 %v1106, %v1086
  %v1123 = vmax.f32 %v1107, %v1087
  %v1124 = vmax.f32 %v1108, %v1092
  %v1125 = vmax.f32 %v1109, %v1093
  %v1126 = vld [vmem:[%s2] sm:$0x3]
  %v1128 = vlaneseq
  %v1129 = vshrl.u32 %v1128, 7
  %v1130 = vsub.s32 0, %v1129
  %v1131 = vrot.slane %v1126, %v1130
  %v1132 = vlaneseq
  %v1133 = vshrl.u32 %v1132, 7
  %v1134 = vsub.s32 1, %v1133
  %v1135 = vrot.slane %v1126, %v1134
  %v1138 = vadd.f32 %v1110, %v1131
  %v1139 = vadd.f32 %v1111, %v1135
  %v1140 = vadd.f32 %v1112, %v1131
  %v1141 = vadd.f32 %v1113, %v1135
  %v1142 = vadd.f32 %v1114, %v1131
  %v1143 = vadd.f32 %v1115, %v1135
  %v1144 = vadd.f32 %v1116, %v1131
  %v1145 = vadd.f32 %v1117, %v1135
  %v1146 = vadd.f32 %v1118, %v1131
  %v1147 = vadd.f32 %v1119, %v1135
  %v1148 = vadd.f32 %v1120, %v1131
  %v1149 = vadd.f32 %v1121, %v1135
  %v1150 = vadd.f32 %v1122, %v1131
  %v1151 = vadd.f32 %v1123, %v1135
  %v1152 = vadd.f32 %v1124, %v1131
  %v1153 = vadd.f32 %v1125, %v1135
  %v1154 = vmax.f32 %v1138, 0.0
  %v1155 = vmax.f32 %v1139, 0.0
  %v1156 = vmax.f32 %v1140, 0.0
  %v1157 = vmax.f32 %v1141, 0.0
  %v1158 = vmax.f32 %v1142, 0.0
  %v1159 = vmax.f32 %v1143, 0.0
  %v1160 = vmax.f32 %v1144, 0.0
  %v1161 = vmax.f32 %v1145, 0.0
  %v1162 = vmax.f32 %v1146, 0.0
  %v1163 = vmax.f32 %v1147, 0.0
  %v1164 = vmax.f32 %v1148, 0.0
  %v1165 = vmax.f32 %v1149, 0.0
  %v1166 = vmax.f32 %v1150, 0.0
  %v1167 = vmax.f32 %v1151, 0.0
  %v1168 = vmax.f32 %v1152, 0.0
  %v1169 = vmax.f32 %v1153, 0.0
  %v1170 = vpack.c.bf16 %v1154, %v1154
  %v1171 = vpack.c.bf16 %v1155, %v1155
  %v1172 = vpack.c.bf16 %v1156, %v1156
  %v1173 = vpack.c.bf16 %v1157, %v1157
  %v1174 = vpack.c.bf16 %v1158, %v1158
  %v1175 = vpack.c.bf16 %v1159, %v1159
  %v1176 = vpack.c.bf16 %v1160, %v1160
  %v1177 = vpack.c.bf16 %v1161, %v1161
  %v1178 = vpack.c.bf16 %v1162, %v1162
  %v1179 = vpack.c.bf16 %v1163, %v1163
  %v1180 = vpack.c.bf16 %v1164, %v1164
  %v1181 = vpack.c.bf16 %v1165, %v1165
  %v1182 = vpack.c.bf16 %v1166, %v1166
  %v1183 = vpack.c.bf16 %v1167, %v1167
  %v1184 = vpack.c.bf16 %v1168, %v1168
  %v1185 = vpack.c.bf16 %v1169, %v1169
  %v1194 = vunpack.c.l.b16 %v1170
  %v1195 = vunpack.c.l.b16 %v1171
  %v1196 = vunpack.c.l.b16 %v1172
  %v1197 = vunpack.c.l.b16 %v1173
  %v1198 = vunpack.c.l.b16 %v1174
  %v1199 = vunpack.c.l.b16 %v1175
  %v1200 = vunpack.c.l.b16 %v1176
  %v1201 = vunpack.c.l.b16 %v1177
  %v1204 = vunpack.c.l.b16 %v1178
  %v1205 = vunpack.c.l.b16 %v1179
  %v1208 = vunpack.c.l.b16 %v1180
  %v1209 = vunpack.c.l.b16 %v1181
  %v1212 = vunpack.c.l.b16 %v1182
  %v1213 = vunpack.c.l.b16 %v1183
  %v1216 = vunpack.c.l.b16 %v1184
  %v1217 = vunpack.c.l.b16 %v1185
  %v1218 = vpack.c.b16 %v1196, %v1194
  %v1219 = vpack.c.b16 %v1197, %v1195
  %v1220 = vpack.c.b16 %v1200, %v1198
  %v1221 = vpack.c.b16 %v1201, %v1199
  %v1226 = vpack.c.b16 %v1198, %v1196
  %v1227 = vpack.c.b16 %v1199, %v1197
  %v1228 = vpack.c.b16 %v1204, %v1200
  %v1229 = vpack.c.b16 %v1205, %v1201
  %v1234 = vpack.c.b16 %v1208, %v1204
  %v1235 = vpack.c.b16 %v1209, %v1205
  %v1238 = vpack.c.b16 %v1212, %v1208
  %v1239 = vpack.c.b16 %v1213, %v1209
  %v1242 = vpack.c.b16 %v1216, %v1212
  %v1243 = vpack.c.b16 %v1217, %v1213
  %v1246 = vld [vmem:[%s3] sm:$0xff]
  %v1247 = vld [vmem:[%s3 + $0x8] sm:$0xff]
  %v1248 = vld [vmem:[%s3 + $0x10] sm:$0xff]
  %v1249 = vld [vmem:[%s3 + $0x18] sm:$0xff]
  %v1250 = vld [vmem:[%s3 + $0x20] sm:$0xff]
  %v1251 = vld [vmem:[%s3 + $0x28] sm:$0xff]
  %v1252 = vld [vmem:[%s3 + $0x30] sm:$0xff]
  %v1253 = vld [vmem:[%s3 + $0x38] sm:$0xff]
  %v1254 = vld [vmem:[%s3 + $0x40] sm:$0xff]
  %v1255 = vld [vmem:[%s3 + $0x48] sm:$0xff]
  %v1256 = vld [vmem:[%s3 + $0x50] sm:$0xff]
  %v1257 = vld [vmem:[%s3 + $0x58] sm:$0xff]
  %v1258 = vld [vmem:[%s3 + $0x60] sm:$0xff]
  %v1259 = vld [vmem:[%s3 + $0x68] sm:$0xff]
  %v1260 = vld [vmem:[%s3 + $0x70] sm:$0xff]
  %v1261 = vld [vmem:[%s3 + $0x78] sm:$0xff]
  %v1262 = vld [vmem:[%s3 + $0x80] sm:$0xff]
  %v1263 = vld [vmem:[%s3 + $0x88] sm:$0xff]
  %v1264 = vld [vmem:[%s3 + $0x90] sm:$0xff]
  %v1265 = vld [vmem:[%s3 + $0x98] sm:$0xff]
  %v1266 = vld [vmem:[%s3 + $0xa0] sm:$0xff]
  %v1267 = vld [vmem:[%s3 + $0xa8] sm:$0xff]
  %v1268 = vld [vmem:[%s3 + $0xb0] sm:$0xff]
  %v1269 = vld [vmem:[%s3 + $0xb8] sm:$0xff]
  %v1270 = vld [vmem:[%s3 + $0xc0] sm:$0xff]
  %v1271 = vld [vmem:[%s3 + $0xc8] sm:$0xff]
  %v1272 = vld [vmem:[%s3 + $0xd0] sm:$0xff]
  %v1273 = vld [vmem:[%s3 + $0xd8] sm:$0xff]
  %v1274 = vld [vmem:[%s3 + $0xe0] sm:$0xff]
  %v1275 = vld [vmem:[%s3 + $0xe8] sm:$0xff]
  %v1276 = vld [vmem:[%s3 + $0xf0] sm:$0xff]
  %v1277 = vld [vmem:[%s3 + $0xf8] sm:$0xff]
  %v1278 = vld [vmem:[%s3 + $0x100] sm:$0xff]
  %v1279 = vld [vmem:[%s3 + $0x108] sm:$0xff]
  %v1280 = vld [vmem:[%s3 + $0x110] sm:$0xff]
  %v1281 = vld [vmem:[%s3 + $0x118] sm:$0xff]
  %v1282 = vld [vmem:[%s3 + $0x120] sm:$0xff]
  %v1283 = vld [vmem:[%s3 + $0x128] sm:$0xff]
  %v1284 = vld [vmem:[%s3 + $0x130] sm:$0xff]
  %v1285 = vld [vmem:[%s3 + $0x138] sm:$0xff]
  %v1286 = vld [vmem:[%s3 + $0x140] sm:$0xff]
  %v1287 = vld [vmem:[%s3 + $0x148] sm:$0xff]
  %v1288 = vld [vmem:[%s3 + $0x150] sm:$0xff]
  %v1289 = vld [vmem:[%s3 + $0x158] sm:$0xff]
  %v1290 = vld [vmem:[%s3 + $0x160] sm:$0xff]
  %v1291 = vld [vmem:[%s3 + $0x168] sm:$0xff]
  %v1292 = vld [vmem:[%s3 + $0x170] sm:$0xff]
  %v1293 = vld [vmem:[%s3 + $0x178] sm:$0xff]
  %v1294 = vld [vmem:[%s3 + $0x180] sm:$0xff]
  %v1295 = vld [vmem:[%s3 + $0x188] sm:$0xff]
  %v1296 = vld [vmem:[%s3 + $0x190] sm:$0xff]
  %v1297 = vld [vmem:[%s3 + $0x198] sm:$0xff]
  %v1298 = vld [vmem:[%s3 + $0x1a0] sm:$0xff]
  %v1299 = vld [vmem:[%s3 + $0x1a8] sm:$0xff]
  %v1300 = vld [vmem:[%s3 + $0x1b0] sm:$0xff]
  %v1301 = vld [vmem:[%s3 + $0x1b8] sm:$0xff]
  %v1302 = vld [vmem:[%s3 + $0x1c0] sm:$0xff]
  %v1303 = vld [vmem:[%s3 + $0x1c8] sm:$0xff]
  %v1304 = vld [vmem:[%s3 + $0x1d0] sm:$0xff]
  %v1305 = vld [vmem:[%s3 + $0x1d8] sm:$0xff]
  %v1306 = vld [vmem:[%s3 + $0x1e0] sm:$0xff]
  %v1307 = vld [vmem:[%s3 + $0x1e8] sm:$0xff]
  %v1308 = vld [vmem:[%s3 + $0x1f0] sm:$0xff]
  %v1309 = vld [vmem:[%s3 + $0x1f8] sm:$0xff]
  %v1310 = vld [vmem:[%s3 + $0x200] sm:$0xff]
  %v1311 = vld [vmem:[%s3 + $0x208] sm:$0xff]
  %v1312 = vld [vmem:[%s3 + $0x210] sm:$0xff]
  %v1313 = vld [vmem:[%s3 + $0x218] sm:$0xff]
  %v1314 = vld [vmem:[%s3 + $0x220] sm:$0xff]
  %v1315 = vld [vmem:[%s3 + $0x228] sm:$0xff]
  %v1316 = vld [vmem:[%s3 + $0x230] sm:$0xff]
  %v1317 = vld [vmem:[%s3 + $0x238] sm:$0xff]
  %v1318 = vld [vmem:[%s3 + $0x240] sm:$0xff]
  %v1319 = vld [vmem:[%s3 + $0x248] sm:$0xff]
  %v1320 = vld [vmem:[%s3 + $0x250] sm:$0xff]
  %v1321 = vld [vmem:[%s3 + $0x258] sm:$0xff]
  %v1322 = vld [vmem:[%s3 + $0x260] sm:$0xff]
  %v1323 = vld [vmem:[%s3 + $0x268] sm:$0xff]
  %v1324 = vld [vmem:[%s3 + $0x270] sm:$0xff]
  %v1325 = vld [vmem:[%s3 + $0x278] sm:$0xff]
  %v1326 = vld [vmem:[%s3 + $0x280] sm:$0xff]
  %v1327 = vld [vmem:[%s3 + $0x288] sm:$0xff]
  %v1328 = vld [vmem:[%s3 + $0x290] sm:$0xff]
  %v1329 = vld [vmem:[%s3 + $0x298] sm:$0xff]
  %v1330 = vld [vmem:[%s3 + $0x2a0] sm:$0xff]
  %v1331 = vld [vmem:[%s3 + $0x2a8] sm:$0xff]
  %v1332 = vld [vmem:[%s3 + $0x2b0] sm:$0xff]
  %v1333 = vld [vmem:[%s3 + $0x2b8] sm:$0xff]
  %v1334 = vld [vmem:[%s3 + $0x2c0] sm:$0xff]
  %v1335 = vld [vmem:[%s3 + $0x2c8] sm:$0xff]
  %v1336 = vld [vmem:[%s3 + $0x2d0] sm:$0xff]
  %v1337 = vld [vmem:[%s3 + $0x2d8] sm:$0xff]
  %v1338 = vld [vmem:[%s3 + $0x2e0] sm:$0xff]
  %v1339 = vld [vmem:[%s3 + $0x2e8] sm:$0xff]
  %v1340 = vld [vmem:[%s3 + $0x2f0] sm:$0xff]
  %v1341 = vld [vmem:[%s3 + $0x2f8] sm:$0xff]
  %v1342 = vld [vmem:[%s3 + $0x300] sm:$0xff]
  %v1343 = vld [vmem:[%s3 + $0x308] sm:$0xff]
  %v1344 = vld [vmem:[%s3 + $0x310] sm:$0xff]
  %v1345 = vld [vmem:[%s3 + $0x318] sm:$0xff]
  %v1346 = vld [vmem:[%s3 + $0x320] sm:$0xff]
  %v1347 = vld [vmem:[%s3 + $0x328] sm:$0xff]
  %v1348 = vld [vmem:[%s3 + $0x330] sm:$0xff]
  %v1349 = vld [vmem:[%s3 + $0x338] sm:$0xff]
  %v1350 = vld [vmem:[%s3 + $0x340] sm:$0xff]
  %v1351 = vld [vmem:[%s3 + $0x348] sm:$0xff]
  %v1352 = vld [vmem:[%s3 + $0x350] sm:$0xff]
  %v1353 = vld [vmem:[%s3 + $0x358] sm:$0xff]
  %v1354 = vld [vmem:[%s3 + $0x360] sm:$0xff]
  %v1355 = vld [vmem:[%s3 + $0x368] sm:$0xff]
  %v1356 = vld [vmem:[%s3 + $0x370] sm:$0xff]
  %v1357 = vld [vmem:[%s3 + $0x378] sm:$0xff]
  %v1358 = vld [vmem:[%s3 + $0x380] sm:$0xff]
  %v1359 = vld [vmem:[%s3 + $0x388] sm:$0xff]
  %v1360 = vld [vmem:[%s3 + $0x390] sm:$0xff]
  %v1361 = vld [vmem:[%s3 + $0x398] sm:$0xff]
  %v1362 = vld [vmem:[%s3 + $0x3a0] sm:$0xff]
  %v1363 = vld [vmem:[%s3 + $0x3a8] sm:$0xff]
  %v1364 = vld [vmem:[%s3 + $0x3b0] sm:$0xff]
  %v1365 = vld [vmem:[%s3 + $0x3b8] sm:$0xff]
  %v1366 = vld [vmem:[%s3 + $0x3c0] sm:$0xff]
  %v1367 = vld [vmem:[%s3 + $0x3c8] sm:$0xff]
  %v1368 = vld [vmem:[%s3 + $0x3d0] sm:$0xff]
  %v1369 = vld [vmem:[%s3 + $0x3d8] sm:$0xff]
  %v1370 = vld [vmem:[%s3 + $0x3e0] sm:$0xff]
  %v1371 = vld [vmem:[%s3 + $0x3e8] sm:$0xff]
  %v1372 = vld [vmem:[%s3 + $0x3f0] sm:$0xff]
  %v1373 = vld [vmem:[%s3 + $0x3f8] sm:$0xff]
  %v1374 = vld [vmem:[%s3 + $0x400] sm:$0xff]
  %v1375 = vld [vmem:[%s3 + $0x408] sm:$0xff]
  %v1376 = vld [vmem:[%s3 + $0x410] sm:$0xff]
  %v1377 = vld [vmem:[%s3 + $0x418] sm:$0xff]
  %v1378 = vld [vmem:[%s3 + $0x420] sm:$0xff]
  %v1379 = vld [vmem:[%s3 + $0x428] sm:$0xff]
  %v1380 = vld [vmem:[%s3 + $0x430] sm:$0xff]
  %v1381 = vld [vmem:[%s3 + $0x438] sm:$0xff]
  %v1382 = vld [vmem:[%s3 + $0x440] sm:$0xff]
  %v1383 = vld [vmem:[%s3 + $0x448] sm:$0xff]
  %v1384 = vld [vmem:[%s3 + $0x450] sm:$0xff]
  %v1385 = vld [vmem:[%s3 + $0x458] sm:$0xff]
  %v1386 = vld [vmem:[%s3 + $0x460] sm:$0xff]
  %v1387 = vld [vmem:[%s3 + $0x468] sm:$0xff]
  %v1388 = vld [vmem:[%s3 + $0x470] sm:$0xff]
  %v1389 = vld [vmem:[%s3 + $0x478] sm:$0xff]
  %v1390 = vld [vmem:[%s3 + $0x480] sm:$0xff]
  %v1391 = vld [vmem:[%s3 + $0x488] sm:$0xff]
  %v1392 = vld [vmem:[%s3 + $0x490] sm:$0xff]
  %v1393 = vld [vmem:[%s3 + $0x498] sm:$0xff]
  %v1394 = vld [vmem:[%s3 + $0x4a0] sm:$0xff]
  %v1395 = vld [vmem:[%s3 + $0x4a8] sm:$0xff]
  %v1396 = vld [vmem:[%s3 + $0x4b0] sm:$0xff]
  %v1397 = vld [vmem:[%s3 + $0x4b8] sm:$0xff]
  %v1398 = vld [vmem:[%s3 + $0x4c0] sm:$0xff]
  %v1399 = vld [vmem:[%s3 + $0x4c8] sm:$0xff]
  %v1400 = vld [vmem:[%s3 + $0x4d0] sm:$0xff]
  %v1401 = vld [vmem:[%s3 + $0x4d8] sm:$0xff]
  %v1402 = vld [vmem:[%s3 + $0x4e0] sm:$0xff]
  %v1403 = vld [vmem:[%s3 + $0x4e8] sm:$0xff]
  %v1404 = vld [vmem:[%s3 + $0x4f0] sm:$0xff]
  %v1405 = vld [vmem:[%s3 + $0x4f8] sm:$0xff]
  %v1566 = vunpack.c.l.b16 %v1246
  %v1567 = vunpack.c.h.b16 %v1246
  %v1568 = vunpack.c.l.b16 %v1247
  %v1569 = vunpack.c.h.b16 %v1247
  %v1570 = vunpack.c.l.b16 %v1248
  %v1571 = vunpack.c.h.b16 %v1248
  %v1572 = vunpack.c.l.b16 %v1249
  %v1573 = vunpack.c.h.b16 %v1249
  %v1574 = vunpack.c.l.b16 %v1250
  %v1575 = vunpack.c.h.b16 %v1250
  %v1576 = vunpack.c.l.b16 %v1251
  %v1577 = vunpack.c.h.b16 %v1251
  %v1578 = vunpack.c.l.b16 %v1252
  %v1579 = vunpack.c.h.b16 %v1252
  %v1580 = vunpack.c.l.b16 %v1253
  %v1581 = vunpack.c.h.b16 %v1253
  %v1582 = vunpack.c.l.b16 %v1254
  %v1583 = vunpack.c.h.b16 %v1254
  %v1584 = vunpack.c.l.b16 %v1255
  %v1585 = vunpack.c.h.b16 %v1255
  %v1586 = vunpack.c.l.b16 %v1256
  %v1587 = vunpack.c.h.b16 %v1256
  %v1588 = vunpack.c.l.b16 %v1257
  %v1589 = vunpack.c.h.b16 %v1257
  %v1590 = vunpack.c.l.b16 %v1258
  %v1591 = vunpack.c.h.b16 %v1258
  %v1592 = vunpack.c.l.b16 %v1259
  %v1593 = vunpack.c.h.b16 %v1259
  %v1594 = vunpack.c.l.b16 %v1260
  %v1595 = vunpack.c.h.b16 %v1260
  %v1596 = vunpack.c.l.b16 %v1261
  %v1597 = vunpack.c.h.b16 %v1261
  %v1598 = vunpack.c.l.b16 %v1262
  %v1599 = vunpack.c.h.b16 %v1262
  %v1600 = vunpack.c.l.b16 %v1263
  %v1601 = vunpack.c.h.b16 %v1263
  %v1602 = vunpack.c.l.b16 %v1264
  %v1603 = vunpack.c.h.b16 %v1264
  %v1604 = vunpack.c.l.b16 %v1265
  %v1605 = vunpack.c.h.b16 %v1265
  %v1606 = vunpack.c.l.b16 %v1266
  %v1607 = vunpack.c.h.b16 %v1266
  %v1608 = vunpack.c.l.b16 %v1267
  %v1609 = vunpack.c.h.b16 %v1267
  %v1610 = vunpack.c.l.b16 %v1268
  %v1611 = vunpack.c.h.b16 %v1268
  %v1612 = vunpack.c.l.b16 %v1269
  %v1613 = vunpack.c.h.b16 %v1269
  %v1614 = vunpack.c.l.b16 %v1270
  %v1615 = vunpack.c.h.b16 %v1270
  %v1616 = vunpack.c.l.b16 %v1271
  %v1617 = vunpack.c.h.b16 %v1271
  %v1618 = vunpack.c.l.b16 %v1272
  %v1619 = vunpack.c.h.b16 %v1272
  %v1620 = vunpack.c.l.b16 %v1273
  %v1621 = vunpack.c.h.b16 %v1273
  %v1622 = vunpack.c.l.b16 %v1274
  %v1623 = vunpack.c.h.b16 %v1274
  %v1624 = vunpack.c.l.b16 %v1275
  %v1625 = vunpack.c.h.b16 %v1275
  %v1626 = vunpack.c.l.b16 %v1276
  %v1627 = vunpack.c.h.b16 %v1276
  %v1628 = vunpack.c.l.b16 %v1277
  %v1629 = vunpack.c.h.b16 %v1277
  %v1630 = vunpack.c.l.b16 %v1278
  %v1631 = vunpack.c.h.b16 %v1278
  %v1632 = vunpack.c.l.b16 %v1279
  %v1633 = vunpack.c.h.b16 %v1279
  %v1634 = vunpack.c.l.b16 %v1280
  %v1635 = vunpack.c.h.b16 %v1280
  %v1636 = vunpack.c.l.b16 %v1281
  %v1637 = vunpack.c.h.b16 %v1281
  %v1638 = vunpack.c.l.b16 %v1282
  %v1639 = vunpack.c.h.b16 %v1282
  %v1640 = vunpack.c.l.b16 %v1283
  %v1641 = vunpack.c.h.b16 %v1283
  %v1642 = vunpack.c.l.b16 %v1284
  %v1643 = vunpack.c.h.b16 %v1284
  %v1644 = vunpack.c.l.b16 %v1285
  %v1645 = vunpack.c.h.b16 %v1285
  %v1646 = vunpack.c.l.b16 %v1286
  %v1647 = vunpack.c.h.b16 %v1286
  %v1648 = vunpack.c.l.b16 %v1287
  %v1649 = vunpack.c.h.b16 %v1287
  %v1650 = vunpack.c.l.b16 %v1288
  %v1651 = vunpack.c.h.b16 %v1288
  %v1652 = vunpack.c.l.b16 %v1289
  %v1653 = vunpack.c.h.b16 %v1289
  %v1654 = vunpack.c.l.b16 %v1290
  %v1655 = vunpack.c.h.b16 %v1290
  %v1656 = vunpack.c.l.b16 %v1291
  %v1657 = vunpack.c.h.b16 %v1291
  %v1658 = vunpack.c.l.b16 %v1292
  %v1659 = vunpack.c.h.b16 %v1292
  %v1660 = vunpack.c.l.b16 %v1293
  %v1661 = vunpack.c.h.b16 %v1293
  %v1662 = vunpack.c.l.b16 %v1294
  %v1663 = vunpack.c.h.b16 %v1294
  %v1664 = vunpack.c.l.b16 %v1295
  %v1665 = vunpack.c.h.b16 %v1295
  %v1666 = vunpack.c.l.b16 %v1296
  %v1667 = vunpack.c.h.b16 %v1296
  %v1668 = vunpack.c.l.b16 %v1297
  %v1669 = vunpack.c.h.b16 %v1297
  %v1670 = vunpack.c.l.b16 %v1298
  %v1671 = vunpack.c.h.b16 %v1298
  %v1672 = vunpack.c.l.b16 %v1299
  %v1673 = vunpack.c.h.b16 %v1299
  %v1674 = vunpack.c.l.b16 %v1300
  %v1675 = vunpack.c.h.b16 %v1300
  %v1676 = vunpack.c.l.b16 %v1301
  %v1677 = vunpack.c.h.b16 %v1301
  %v1678 = vunpack.c.l.b16 %v1302
  %v1679 = vunpack.c.h.b16 %v1302
  %v1680 = vunpack.c.l.b16 %v1303
  %v1681 = vunpack.c.h.b16 %v1303
  %v1682 = vunpack.c.l.b16 %v1304
  %v1683 = vunpack.c.h.b16 %v1304
  %v1684 = vunpack.c.l.b16 %v1305
  %v1685 = vunpack.c.h.b16 %v1305
  %v1686 = vunpack.c.l.b16 %v1306
  %v1687 = vunpack.c.h.b16 %v1306
  %v1688 = vunpack.c.l.b16 %v1307
  %v1689 = vunpack.c.h.b16 %v1307
  %v1690 = vunpack.c.l.b16 %v1308
  %v1691 = vunpack.c.h.b16 %v1308
  %v1692 = vunpack.c.l.b16 %v1309
  %v1693 = vunpack.c.h.b16 %v1309
  %v1694 = vunpack.c.l.b16 %v1310
  %v1695 = vunpack.c.h.b16 %v1310
  %v1696 = vunpack.c.l.b16 %v1311
  %v1697 = vunpack.c.h.b16 %v1311
  %v1698 = vunpack.c.l.b16 %v1312
  %v1699 = vunpack.c.h.b16 %v1312
  %v1700 = vunpack.c.l.b16 %v1313
  %v1701 = vunpack.c.h.b16 %v1313
  %v1702 = vunpack.c.l.b16 %v1314
  %v1703 = vunpack.c.h.b16 %v1314
  %v1704 = vunpack.c.l.b16 %v1315
  %v1705 = vunpack.c.h.b16 %v1315
  %v1706 = vunpack.c.l.b16 %v1316
  %v1707 = vunpack.c.h.b16 %v1316
  %v1708 = vunpack.c.l.b16 %v1317
  %v1709 = vunpack.c.h.b16 %v1317
  %v1710 = vunpack.c.l.b16 %v1318
  %v1711 = vunpack.c.h.b16 %v1318
  %v1712 = vunpack.c.l.b16 %v1319
  %v1713 = vunpack.c.h.b16 %v1319
  %v1714 = vunpack.c.l.b16 %v1320
  %v1715 = vunpack.c.h.b16 %v1320
  %v1716 = vunpack.c.l.b16 %v1321
  %v1717 = vunpack.c.h.b16 %v1321
  %v1718 = vunpack.c.l.b16 %v1322
  %v1719 = vunpack.c.h.b16 %v1322
  %v1720 = vunpack.c.l.b16 %v1323
  %v1721 = vunpack.c.h.b16 %v1323
  %v1722 = vunpack.c.l.b16 %v1324
  %v1723 = vunpack.c.h.b16 %v1324
  %v1724 = vunpack.c.l.b16 %v1325
  %v1725 = vunpack.c.h.b16 %v1325
  %v1726 = vunpack.c.l.b16 %v1326
  %v1727 = vunpack.c.h.b16 %v1326
  %v1728 = vunpack.c.l.b16 %v1327
  %v1729 = vunpack.c.h.b16 %v1327
  %v1730 = vunpack.c.l.b16 %v1328
  %v1731 = vunpack.c.h.b16 %v1328
  %v1732 = vunpack.c.l.b16 %v1329
  %v1733 = vunpack.c.h.b16 %v1329
  %v1734 = vunpack.c.l.b16 %v1330
  %v1735 = vunpack.c.h.b16 %v1330
  %v1736 = vunpack.c.l.b16 %v1331
  %v1737 = vunpack.c.h.b16 %v1331
  %v1738 = vunpack.c.l.b16 %v1332
  %v1739 = vunpack.c.h.b16 %v1332
  %v1740 = vunpack.c.l.b16 %v1333
  %v1741 = vunpack.c.h.b16 %v1333
  %v1742 = vunpack.c.l.b16 %v1334
  %v1743 = vunpack.c.h.b16 %v1334
  %v1744 = vunpack.c.l.b16 %v1335
  %v1745 = vunpack.c.h.b16 %v1335
  %v1746 = vunpack.c.l.b16 %v1336
  %v1747 = vunpack.c.h.b16 %v1336
  %v1748 = vunpack.c.l.b16 %v1337
  %v1749 = vunpack.c.h.b16 %v1337
  %v1750 = vunpack.c.l.b16 %v1338
  %v1751 = vunpack.c.h.b16 %v1338
  %v1752 = vunpack.c.l.b16 %v1339
  %v1753 = vunpack.c.h.b16 %v1339
  %v1754 = vunpack.c.l.b16 %v1340
  %v1755 = vunpack.c.h.b16 %v1340
  %v1756 = vunpack.c.l.b16 %v1341
  %v1757 = vunpack.c.h.b16 %v1341
  %v1758 = vunpack.c.l.b16 %v1342
  %v1759 = vunpack.c.h.b16 %v1342
  %v1760 = vunpack.c.l.b16 %v1343
  %v1761 = vunpack.c.h.b16 %v1343
  %v1762 = vunpack.c.l.b16 %v1344
  %v1763 = vunpack.c.h.b16 %v1344
  %v1764 = vunpack.c.l.b16 %v1345
  %v1765 = vunpack.c.h.b16 %v1345
  %v1766 = vunpack.c.l.b16 %v1346
  %v1767 = vunpack.c.h.b16 %v1346
  %v1768 = vunpack.c.l.b16 %v1347
  %v1769 = vunpack.c.h.b16 %v1347
  %v1770 = vunpack.c.l.b16 %v1348
  %v1771 = vunpack.c.h.b16 %v1348
  %v1772 = vunpack.c.l.b16 %v1349
  %v1773 = vunpack.c.h.b16 %v1349
  %v1774 = vunpack.c.l.b16 %v1350
  %v1775 = vunpack.c.h.b16 %v1350
  %v1776 = vunpack.c.l.b16 %v1351
  %v1777 = vunpack.c.h.b16 %v1351
  %v1778 = vunpack.c.l.b16 %v1352
  %v1779 = vunpack.c.h.b16 %v1352
  %v1780 = vunpack.c.l.b16 %v1353
  %v1781 = vunpack.c.h.b16 %v1353
  %v1782 = vunpack.c.l.b16 %v1354
  %v1783 = vunpack.c.h.b16 %v1354
  %v1784 = vunpack.c.l.b16 %v1355
  %v1785 = vunpack.c.h.b16 %v1355
  %v1786 = vunpack.c.l.b16 %v1356
  %v1787 = vunpack.c.h.b16 %v1356
  %v1788 = vunpack.c.l.b16 %v1357
  %v1789 = vunpack.c.h.b16 %v1357
  %v1790 = vunpack.c.l.b16 %v1358
  %v1791 = vunpack.c.h.b16 %v1358
  %v1792 = vunpack.c.l.b16 %v1359
  %v1793 = vunpack.c.h.b16 %v1359
  %v1794 = vunpack.c.l.b16 %v1360
  %v1795 = vunpack.c.h.b16 %v1360
  %v1796 = vunpack.c.l.b16 %v1361
  %v1797 = vunpack.c.h.b16 %v1361
  %v1798 = vunpack.c.l.b16 %v1362
  %v1799 = vunpack.c.h.b16 %v1362
  %v1800 = vunpack.c.l.b16 %v1363
  %v1801 = vunpack.c.h.b16 %v1363
  %v1802 = vunpack.c.l.b16 %v1364
  %v1803 = vunpack.c.h.b16 %v1364
  %v1804 = vunpack.c.l.b16 %v1365
  %v1805 = vunpack.c.h.b16 %v1365
  %v1806 = vunpack.c.l.b16 %v1366
  %v1807 = vunpack.c.h.b16 %v1366
  %v1808 = vunpack.c.l.b16 %v1367
  %v1809 = vunpack.c.h.b16 %v1367
  %v1810 = vunpack.c.l.b16 %v1368
  %v1811 = vunpack.c.h.b16 %v1368
  %v1812 = vunpack.c.l.b16 %v1369
  %v1813 = vunpack.c.h.b16 %v1369
  %v1814 = vunpack.c.l.b16 %v1370
  %v1815 = vunpack.c.h.b16 %v1370
  %v1816 = vunpack.c.l.b16 %v1371
  %v1817 = vunpack.c.h.b16 %v1371
  %v1818 = vunpack.c.l.b16 %v1372
  %v1819 = vunpack.c.h.b16 %v1372
  %v1820 = vunpack.c.l.b16 %v1373
  %v1821 = vunpack.c.h.b16 %v1373
  %v1822 = vunpack.c.l.b16 %v1374
  %v1823 = vunpack.c.h.b16 %v1374
  %v1824 = vunpack.c.l.b16 %v1375
  %v1825 = vunpack.c.h.b16 %v1375
  %v1826 = vunpack.c.l.b16 %v1376
  %v1827 = vunpack.c.h.b16 %v1376
  %v1828 = vunpack.c.l.b16 %v1377
  %v1829 = vunpack.c.h.b16 %v1377
  %v1830 = vunpack.c.l.b16 %v1378
  %v1831 = vunpack.c.h.b16 %v1378
  %v1832 = vunpack.c.l.b16 %v1379
  %v1833 = vunpack.c.h.b16 %v1379
  %v1834 = vunpack.c.l.b16 %v1380
  %v1835 = vunpack.c.h.b16 %v1380
  %v1836 = vunpack.c.l.b16 %v1381
  %v1837 = vunpack.c.h.b16 %v1381
  %v1838 = vunpack.c.l.b16 %v1382
  %v1839 = vunpack.c.h.b16 %v1382
  %v1840 = vunpack.c.l.b16 %v1383
  %v1841 = vunpack.c.h.b16 %v1383
  %v1842 = vunpack.c.l.b16 %v1384
  %v1843 = vunpack.c.h.b16 %v1384
  %v1844 = vunpack.c.l.b16 %v1385
  %v1845 = vunpack.c.h.b16 %v1385
  %v1846 = vunpack.c.l.b16 %v1386
  %v1847 = vunpack.c.h.b16 %v1386
  %v1848 = vunpack.c.l.b16 %v1387
  %v1849 = vunpack.c.h.b16 %v1387
  %v1850 = vunpack.c.l.b16 %v1388
  %v1851 = vunpack.c.h.b16 %v1388
  %v1852 = vunpack.c.l.b16 %v1389
  %v1853 = vunpack.c.h.b16 %v1389
  %v1854 = vunpack.c.l.b16 %v1390
  %v1855 = vunpack.c.h.b16 %v1390
  %v1856 = vunpack.c.l.b16 %v1391
  %v1857 = vunpack.c.h.b16 %v1391
  %v1858 = vunpack.c.l.b16 %v1392
  %v1859 = vunpack.c.h.b16 %v1392
  %v1860 = vunpack.c.l.b16 %v1393
  %v1861 = vunpack.c.h.b16 %v1393
  %v1862 = vunpack.c.l.b16 %v1394
  %v1863 = vunpack.c.h.b16 %v1394
  %v1864 = vunpack.c.l.b16 %v1395
  %v1865 = vunpack.c.h.b16 %v1395
  %v1866 = vunpack.c.l.b16 %v1396
  %v1867 = vunpack.c.h.b16 %v1396
  %v1868 = vunpack.c.l.b16 %v1397
  %v1869 = vunpack.c.h.b16 %v1397
  %v1870 = vunpack.c.l.b16 %v1398
  %v1871 = vunpack.c.h.b16 %v1398
  %v1872 = vunpack.c.l.b16 %v1399
  %v1873 = vunpack.c.h.b16 %v1399
  %v1874 = vunpack.c.l.b16 %v1400
  %v1875 = vunpack.c.h.b16 %v1400
  %v1876 = vunpack.c.l.b16 %v1401
  %v1877 = vunpack.c.h.b16 %v1401
  %v1878 = vunpack.c.l.b16 %v1402
  %v1879 = vunpack.c.h.b16 %v1402
  %v1880 = vunpack.c.l.b16 %v1403
  %v1881 = vunpack.c.h.b16 %v1403
  %v1882 = vunpack.c.l.b16 %v1404
  %v1883 = vunpack.c.h.b16 %v1404
  %v1884 = vunpack.c.l.b16 %v1405
  %v1885 = vunpack.c.h.b16 %v1405
  %v1886 = vpack.c.b16 %v1568, %v1566
  %v1887 = vpack.c.b16 %v1569, %v1567
  %v1888 = vpack.c.b16 %v1572, %v1570
  %v1889 = vpack.c.b16 %v1573, %v1571
  %v1890 = vpack.c.b16 %v1576, %v1574
  %v1891 = vpack.c.b16 %v1577, %v1575
  %v1892 = vpack.c.b16 %v1580, %v1578
  %v1893 = vpack.c.b16 %v1581, %v1579
  %v1894 = vpack.c.b16 %v1584, %v1582
  %v1895 = vpack.c.b16 %v1585, %v1583
  %v1896 = vpack.c.b16 %v1588, %v1586
  %v1897 = vpack.c.b16 %v1589, %v1587
  %v1898 = vpack.c.b16 %v1592, %v1590
  %v1899 = vpack.c.b16 %v1593, %v1591
  %v1900 = vpack.c.b16 %v1596, %v1594
  %v1901 = vpack.c.b16 %v1597, %v1595
  %v1902 = vpack.c.b16 %v1600, %v1598
  %v1903 = vpack.c.b16 %v1601, %v1599
  %v1904 = vpack.c.b16 %v1604, %v1602
  %v1905 = vpack.c.b16 %v1605, %v1603
  %v1906 = vpack.c.b16 %v1608, %v1606
  %v1907 = vpack.c.b16 %v1609, %v1607
  %v1908 = vpack.c.b16 %v1612, %v1610
  %v1909 = vpack.c.b16 %v1613, %v1611
  %v1910 = vpack.c.b16 %v1616, %v1614
  %v1911 = vpack.c.b16 %v1617, %v1615
  %v1912 = vpack.c.b16 %v1620, %v1618
  %v1913 = vpack.c.b16 %v1621, %v1619
  %v1914 = vpack.c.b16 %v1624, %v1622
  %v1915 = vpack.c.b16 %v1625, %v1623
  %v1916 = vpack.c.b16 %v1628, %v1626
  %v1917 = vpack.c.b16 %v1629, %v1627
  %v1918 = vpack.c.b16 %v1632, %v1630
  %v1919 = vpack.c.b16 %v1633, %v1631
  %v1920 = vpack.c.b16 %v1636, %v1634
  %v1921 = vpack.c.b16 %v1637, %v1635
  %v1922 = vpack.c.b16 %v1640, %v1638
  %v1923 = vpack.c.b16 %v1641, %v1639
  %v1924 = vpack.c.b16 %v1644, %v1642
  %v1925 = vpack.c.b16 %v1645, %v1643
  %v1926 = vpack.c.b16 %v1648, %v1646
  %v1927 = vpack.c.b16 %v1649, %v1647
  %v1928 = vpack.c.b16 %v1652, %v1650
  %v1929 = vpack.c.b16 %v1653, %v1651
  %v1930 = vpack.c.b16 %v1656, %v1654
  %v1931 = vpack.c.b16 %v1657, %v1655
  %v1932 = vpack.c.b16 %v1660, %v1658
  %v1933 = vpack.c.b16 %v1661, %v1659
  %v1934 = vpack.c.b16 %v1664, %v1662
  %v1935 = vpack.c.b16 %v1665, %v1663
  %v1936 = vpack.c.b16 %v1668, %v1666
  %v1937 = vpack.c.b16 %v1669, %v1667
  %v1938 = vpack.c.b16 %v1672, %v1670
  %v1939 = vpack.c.b16 %v1673, %v1671
  %v1940 = vpack.c.b16 %v1676, %v1674
  %v1941 = vpack.c.b16 %v1677, %v1675
  %v1942 = vpack.c.b16 %v1680, %v1678
  %v1943 = vpack.c.b16 %v1681, %v1679
  %v1944 = vpack.c.b16 %v1684, %v1682
  %v1945 = vpack.c.b16 %v1685, %v1683
  %v1946 = vpack.c.b16 %v1688, %v1686
  %v1947 = vpack.c.b16 %v1689, %v1687
  %v1948 = vpack.c.b16 %v1692, %v1690
  %v1949 = vpack.c.b16 %v1693, %v1691
  %v1950 = vpack.c.b16 %v1696, %v1694
  %v1951 = vpack.c.b16 %v1697, %v1695
  %v1952 = vpack.c.b16 %v1700, %v1698
  %v1953 = vpack.c.b16 %v1701, %v1699
  %v1954 = vpack.c.b16 %v1704, %v1702
  %v1955 = vpack.c.b16 %v1705, %v1703
  %v1956 = vpack.c.b16 %v1708, %v1706
  %v1957 = vpack.c.b16 %v1709, %v1707
  %v1958 = vpack.c.b16 %v1712, %v1710
  %v1959 = vpack.c.b16 %v1713, %v1711
  %v1960 = vpack.c.b16 %v1716, %v1714
  %v1961 = vpack.c.b16 %v1717, %v1715
  %v1962 = vpack.c.b16 %v1720, %v1718
  %v1963 = vpack.c.b16 %v1721, %v1719
  %v1964 = vpack.c.b16 %v1724, %v1722
  %v1965 = vpack.c.b16 %v1725, %v1723
  %v1966 = vpack.c.b16 %v1728, %v1726
  %v1967 = vpack.c.b16 %v1729, %v1727
  %v1968 = vpack.c.b16 %v1732, %v1730
  %v1969 = vpack.c.b16 %v1733, %v1731
  %v1970 = vpack.c.b16 %v1736, %v1734
  %v1971 = vpack.c.b16 %v1737, %v1735
  %v1972 = vpack.c.b16 %v1740, %v1738
  %v1973 = vpack.c.b16 %v1741, %v1739
  %v1974 = vpack.c.b16 %v1744, %v1742
  %v1975 = vpack.c.b16 %v1745, %v1743
  %v1976 = vpack.c.b16 %v1748, %v1746
  %v1977 = vpack.c.b16 %v1749, %v1747
  %v1978 = vpack.c.b16 %v1752, %v1750
  %v1979 = vpack.c.b16 %v1753, %v1751
  %v1980 = vpack.c.b16 %v1756, %v1754
  %v1981 = vpack.c.b16 %v1757, %v1755
  %v1982 = vpack.c.b16 %v1760, %v1758
  %v1983 = vpack.c.b16 %v1761, %v1759
  %v1984 = vpack.c.b16 %v1764, %v1762
  %v1985 = vpack.c.b16 %v1765, %v1763
  %v1986 = vpack.c.b16 %v1768, %v1766
  %v1987 = vpack.c.b16 %v1769, %v1767
  %v1988 = vpack.c.b16 %v1772, %v1770
  %v1989 = vpack.c.b16 %v1773, %v1771
  %v1990 = vpack.c.b16 %v1776, %v1774
  %v1991 = vpack.c.b16 %v1777, %v1775
  %v1992 = vpack.c.b16 %v1780, %v1778
  %v1993 = vpack.c.b16 %v1781, %v1779
  %v1994 = vpack.c.b16 %v1784, %v1782
  %v1995 = vpack.c.b16 %v1785, %v1783
  %v1996 = vpack.c.b16 %v1788, %v1786
  %v1997 = vpack.c.b16 %v1789, %v1787
  %v1998 = vpack.c.b16 %v1792, %v1790
  %v1999 = vpack.c.b16 %v1793, %v1791
  %v2000 = vpack.c.b16 %v1796, %v1794
  %v2001 = vpack.c.b16 %v1797, %v1795
  %v2002 = vpack.c.b16 %v1800, %v1798
  %v2003 = vpack.c.b16 %v1801, %v1799
  %v2004 = vpack.c.b16 %v1804, %v1802
  %v2005 = vpack.c.b16 %v1805, %v1803
  %v2006 = vpack.c.b16 %v1808, %v1806
  %v2007 = vpack.c.b16 %v1809, %v1807
  %v2008 = vpack.c.b16 %v1812, %v1810
  %v2009 = vpack.c.b16 %v1813, %v1811
  %v2010 = vpack.c.b16 %v1816, %v1814
  %v2011 = vpack.c.b16 %v1817, %v1815
  %v2012 = vpack.c.b16 %v1820, %v1818
  %v2013 = vpack.c.b16 %v1821, %v1819
  %v2014 = vpack.c.b16 %v1824, %v1822
  %v2015 = vpack.c.b16 %v1825, %v1823
  %v2016 = vpack.c.b16 %v1828, %v1826
  %v2017 = vpack.c.b16 %v1829, %v1827
  %v2018 = vpack.c.b16 %v1832, %v1830
  %v2019 = vpack.c.b16 %v1833, %v1831
  %v2020 = vpack.c.b16 %v1836, %v1834
  %v2021 = vpack.c.b16 %v1837, %v1835
  %v2022 = vpack.c.b16 %v1840, %v1838
  %v2023 = vpack.c.b16 %v1841, %v1839
  %v2024 = vpack.c.b16 %v1844, %v1842
  %v2025 = vpack.c.b16 %v1845, %v1843
  %v2026 = vpack.c.b16 %v1848, %v1846
  %v2027 = vpack.c.b16 %v1849, %v1847
  %v2028 = vpack.c.b16 %v1852, %v1850
  %v2029 = vpack.c.b16 %v1853, %v1851
  %v2030 = vpack.c.b16 %v1856, %v1854
  %v2031 = vpack.c.b16 %v1857, %v1855
  %v2032 = vpack.c.b16 %v1860, %v1858
  %v2033 = vpack.c.b16 %v1861, %v1859
  %v2034 = vpack.c.b16 %v1864, %v1862
  %v2035 = vpack.c.b16 %v1865, %v1863
  %v2036 = vpack.c.b16 %v1868, %v1866
  %v2037 = vpack.c.b16 %v1869, %v1867
  %v2038 = vpack.c.b16 %v1872, %v1870
  %v2039 = vpack.c.b16 %v1873, %v1871
  %v2040 = vpack.c.b16 %v1876, %v1874
  %v2041 = vpack.c.b16 %v1877, %v1875
  %v2042 = vpack.c.b16 %v1880, %v1878
  %v2043 = vpack.c.b16 %v1881, %v1879
  %v2044 = vpack.c.b16 %v1884, %v1882
  %v2045 = vpack.c.b16 %v1885, %v1883
  %2206 = vmatprep.subr.bf16.mxu0 %v1901
  %2207 = vmatpush1.bf16.msra.mxu0 %v1900
  %2208 = vmatprep.subr.bf16.mxu0 %v1899
  %2209 = vmatpush1.bf16.msra.mxu0 %v1898
  %2210 = vmatprep.subr.bf16.mxu0 %v1897
  %2211 = vmatpush1.bf16.msra.mxu0 %v1896
  %2212 = vmatprep.subr.bf16.mxu0 %v1895
  %2213 = vmatpush1.bf16.msra.mxu0 %v1894
  %2214 = vmatprep.subr.bf16.mxu0 %v1893
  %2215 = vmatpush1.bf16.msra.mxu0 %v1892
  %2216 = vmatprep.subr.bf16.mxu0 %v1891
  %2217 = vmatpush1.bf16.msra.mxu0 %v1890
  %2218 = vmatprep.subr.bf16.mxu0 %v1889
  %2219 = vmatpush1.bf16.msra.mxu0 %v1888
  %2220 = vmatprep.subr.bf16.mxu0 %v1887
  %2221 = vmatpush1.bf16.msra.mxu0 %v1886
  %2222 = vmatprep.subr.bf16.mxu0 %v1917
  %2223 = vmatpush2.bf16.msra.mxu0 %v1916
  %2224 = vmatprep.subr.bf16.mxu0 %v1915
  %2225 = vmatpush2.bf16.msra.mxu0 %v1914
  %2226 = vmatprep.subr.bf16.mxu0 %v1913
  %2227 = vmatpush2.bf16.msra.mxu0 %v1912
  %2228 = vmatprep.subr.bf16.mxu0 %v1911
  %2229 = vmatpush2.bf16.msra.mxu0 %v1910
  %2230 = vmatprep.subr.bf16.mxu0 %v1909
  %2231 = vmatpush2.bf16.msra.mxu0 %v1908
  %2232 = vmatprep.subr.bf16.mxu0 %v1907
  %2233 = vmatpush2.bf16.msra.mxu0 %v1906
  %2234 = vmatprep.subr.bf16.mxu0 %v1905
  %2235 = vmatpush2.bf16.msra.mxu0 %v1904
  %2236 = vmatprep.subr.bf16.mxu0 %v1903
  %2237 = vmatpush2.bf16.msra.mxu0 %v1902
  %2238 = vmatprep.mubr.bf16.mxu0 %v1219
  %2239 = vmatmul.mubr.bf16.gmra.mxu0 %v1218
  %v2240 = vpop.f32.mrf.mxu0
  %v2241 = vadd.f32 0.0, %v2240
  %v2242 = vpop.f32.mrf.mxu0
  %v2243 = vadd.f32 0.0, %v2242
  %v2244 = vpop.f32.mrf.mxu0
  %v2245 = vadd.f32 0.0, %v2244
  %v2246 = vpop.f32.mrf.mxu0
  %v2247 = vadd.f32 0.0, %v2246
  %2248 = vmatprep.mubr.bf16.mxu0 %v1221
  %2249 = vmatmul.mubr.bf16.gmra.mxu0 %v1220
  %v2250 = vpop.f32.mrf.mxu0
  %v2251 = vadd.f32 0.0, %v2250
  %v2252 = vpop.f32.mrf.mxu0
  %v2253 = vadd.f32 0.0, %v2252
  %v2254 = vpop.f32.mrf.mxu0
  %v2255 = vadd.f32 0.0, %v2254
  %v2256 = vpop.f32.mrf.mxu0
  %v2257 = vadd.f32 0.0, %v2256
  %2258 = vdwg.mxu0
  %2259 = vmatprep.subr.bf16.mxu0 %v1933
  %2260 = vmatpush1.bf16.msra.mxu0 %v1932
  %2261 = vmatprep.subr.bf16.mxu0 %v1931
  %2262 = vmatpush1.bf16.msra.mxu0 %v1930
  %2263 = vmatprep.subr.bf16.mxu0 %v1929
  %2264 = vmatpush1.bf16.msra.mxu0 %v1928
  %2265 = vmatprep.subr.bf16.mxu0 %v1927
  %2266 = vmatpush1.bf16.msra.mxu0 %v1926
  %2267 = vmatprep.subr.bf16.mxu0 %v1925
  %2268 = vmatpush1.bf16.msra.mxu0 %v1924
  %2269 = vmatprep.subr.bf16.mxu0 %v1923
  %2270 = vmatpush1.bf16.msra.mxu0 %v1922
  %2271 = vmatprep.subr.bf16.mxu0 %v1921
  %2272 = vmatpush1.bf16.msra.mxu0 %v1920
  %2273 = vmatprep.subr.bf16.mxu0 %v1919
  %2274 = vmatpush1.bf16.msra.mxu0 %v1918
  %2275 = vmatprep.subr.bf16.mxu0 %v1949
  %2276 = vmatpush2.bf16.msra.mxu0 %v1948
  %2277 = vmatprep.subr.bf16.mxu0 %v1947
  %2278 = vmatpush2.bf16.msra.mxu0 %v1946
  %2279 = vmatprep.subr.bf16.mxu0 %v1945
  %2280 = vmatpush2.bf16.msra.mxu0 %v1944
  %2281 = vmatprep.subr.bf16.mxu0 %v1943
  %2282 = vmatpush2.bf16.msra.mxu0 %v1942
  %2283 = vmatprep.subr.bf16.mxu0 %v1941
  %2284 = vmatpush2.bf16.msra.mxu0 %v1940
  %2285 = vmatprep.subr.bf16.mxu0 %v1939
  %2286 = vmatpush2.bf16.msra.mxu0 %v1938
  %2287 = vmatprep.subr.bf16.mxu0 %v1937
  %2288 = vmatpush2.bf16.msra.mxu0 %v1936
  %2289 = vmatprep.subr.bf16.mxu0 %v1935
  %2290 = vmatpush2.bf16.msra.mxu0 %v1934
  %2291 = vmatprep.mubr.bf16.mxu0 %v1227
  %2292 = vmatmul.mubr.bf16.gmra.mxu0 %v1226
  %v2293 = vpop.f32.mrf.mxu0
  %v2294 = vadd.f32 %v2241, %v2293
  %v2295 = vpop.f32.mrf.mxu0
  %v2296 = vadd.f32 %v2243, %v2295
  %v2297 = vpop.f32.mrf.mxu0
  %v2298 = vadd.f32 %v2245, %v2297
  %v2299 = vpop.f32.mrf.mxu0
  %v2300 = vadd.f32 %v2247, %v2299
  %2301 = vmatprep.mubr.bf16.mxu0 %v1229
  %2302 = vmatmul.mubr.bf16.gmra.mxu0 %v1228
  %v2303 = vpop.f32.mrf.mxu0
  %v2304 = vadd.f32 %v2251, %v2303
  %v2305 = vpop.f32.mrf.mxu0
  %v2306 = vadd.f32 %v2253, %v2305
  %v2307 = vpop.f32.mrf.mxu0
  %v2308 = vadd.f32 %v2255, %v2307
  %v2309 = vpop.f32.mrf.mxu0
  %v2310 = vadd.f32 %v2257, %v2309
  %2311 = vdwg.mxu0
  %2312 = vmatprep.subr.bf16.mxu0 %v1965
  %2313 = vmatpush1.bf16.msra.mxu0 %v1964
  %2314 = vmatprep.subr.bf16.mxu0 %v1963
  %2315 = vmatpush1.bf16.msra.mxu0 %v1962
  %2316 = vmatprep.subr.bf16.mxu0 %v1961
  %2317 = vmatpush1.bf16.msra.mxu0 %v1960
  %2318 = vmatprep.subr.bf16.mxu0 %v1959
  %2319 = vmatpush1.bf16.msra.mxu0 %v1958
  %2320 = vmatprep.subr.bf16.mxu0 %v1957
  %2321 = vmatpush1.bf16.msra.mxu0 %v1956
  %2322 = vmatprep.subr.bf16.mxu0 %v1955
  %2323 = vmatpush1.bf16.msra.mxu0 %v1954
  %2324 = vmatprep.subr.bf16.mxu0 %v1953
  %2325 = vmatpush1.bf16.msra.mxu0 %v1952
  %2326 = vmatprep.subr.bf16.mxu0 %v1951
  %2327 = vmatpush1.bf16.msra.mxu0 %v1950
  %2328 = vmatprep.subr.bf16.mxu0 %v1981
  %2329 = vmatpush2.bf16.msra.mxu0 %v1980
  %2330 = vmatprep.subr.bf16.mxu0 %v1979
  %2331 = vmatpush2.bf16.msra.mxu0 %v1978
  %2332 = vmatprep.subr.bf16.mxu0 %v1977
  %2333 = vmatpush2.bf16.msra.mxu0 %v1976
  %2334 = vmatprep.subr.bf16.mxu0 %v1975
  %2335 = vmatpush2.bf16.msra.mxu0 %v1974
  %2336 = vmatprep.subr.bf16.mxu0 %v1973
  %2337 = vmatpush2.bf16.msra.mxu0 %v1972
  %2338 = vmatprep.subr.bf16.mxu0 %v1971
  %2339 = vmatpush2.bf16.msra.mxu0 %v1970
  %2340 = vmatprep.subr.bf16.mxu0 %v1969
  %2341 = vmatpush2.bf16.msra.mxu0 %v1968
  %2342 = vmatprep.subr.bf16.mxu0 %v1967
  %2343 = vmatpush2.bf16.msra.mxu0 %v1966
  %2344 = vmatprep.mubr.bf16.mxu0 %v1221
  %2345 = vmatmul.mubr.bf16.gmra.mxu0 %v1220
  %v2346 = vpop.f32.mrf.mxu0
  %v2347 = vadd.f32 %v2294, %v2346
  %v2348 = vpop.f32.mrf.mxu0
  %v2349 = vadd.f32 %v2296, %v2348
  %v2350 = vpop.f32.mrf.mxu0
  %v2351 = vadd.f32 %v2298, %v2350
  %v2352 = vpop.f32.mrf.mxu0
  %v2353 = vadd.f32 %v2300, %v2352
  %2354 = vmatprep.mubr.bf16.mxu0 %v1235
  %2355 = vmatmul.mubr.bf16.gmra.mxu0 %v1234
  %v2356 = vpop.f32.mrf.mxu0
  %v2357 = vadd.f32 %v2304, %v2356
  %v2358 = vpop.f32.mrf.mxu0
  %v2359 = vadd.f32 %v2306, %v2358
  %v2360 = vpop.f32.mrf.mxu0
  %v2361 = vadd.f32 %v2308, %v2360
  %v2362 = vpop.f32.mrf.mxu0
  %v2363 = vadd.f32 %v2310, %v2362
  %2364 = vdwg.mxu0
  %2365 = vmatprep.subr.bf16.mxu0 %v1997
  %2366 = vmatpush1.bf16.msra.mxu0 %v1996
  %2367 = vmatprep.subr.bf16.mxu0 %v1995
  %2368 = vmatpush1.bf16.msra.mxu0 %v1994
  %2369 = vmatprep.subr.bf16.mxu0 %v1993
  %2370 = vmatpush1.bf16.msra.mxu0 %v1992
  %2371 = vmatprep.subr.bf16.mxu0 %v1991
  %2372 = vmatpush1.bf16.msra.mxu0 %v1990
  %2373 = vmatprep.subr.bf16.mxu0 %v1989
  %2374 = vmatpush1.bf16.msra.mxu0 %v1988
  %2375 = vmatprep.subr.bf16.mxu0 %v1987
  %2376 = vmatpush1.bf16.msra.mxu0 %v1986
  %2377 = vmatprep.subr.bf16.mxu0 %v1985
  %2378 = vmatpush1.bf16.msra.mxu0 %v1984
  %2379 = vmatprep.subr.bf16.mxu0 %v1983
  %2380 = vmatpush1.bf16.msra.mxu0 %v1982
  %2381 = vmatprep.subr.bf16.mxu0 %v2013
  %2382 = vmatpush2.bf16.msra.mxu0 %v2012
  %2383 = vmatprep.subr.bf16.mxu0 %v2011
  %2384 = vmatpush2.bf16.msra.mxu0 %v2010
  %2385 = vmatprep.subr.bf16.mxu0 %v2009
  %2386 = vmatpush2.bf16.msra.mxu0 %v2008
  %2387 = vmatprep.subr.bf16.mxu0 %v2007
  %2388 = vmatpush2.bf16.msra.mxu0 %v2006
  %2389 = vmatprep.subr.bf16.mxu0 %v2005
  %2390 = vmatpush2.bf16.msra.mxu0 %v2004
  %2391 = vmatprep.subr.bf16.mxu0 %v2003
  %2392 = vmatpush2.bf16.msra.mxu0 %v2002
  %2393 = vmatprep.subr.bf16.mxu0 %v2001
  %2394 = vmatpush2.bf16.msra.mxu0 %v2000
  %2395 = vmatprep.subr.bf16.mxu0 %v1999
  %2396 = vmatpush2.bf16.msra.mxu0 %v1998
  %2397 = vmatprep.mubr.bf16.mxu0 %v1229
  %2398 = vmatmul.mubr.bf16.gmra.mxu0 %v1228
  %v2399 = vpop.f32.mrf.mxu0
  %v2400 = vadd.f32 %v2347, %v2399
  %v2401 = vpop.f32.mrf.mxu0
  %v2402 = vadd.f32 %v2349, %v2401
  %v2403 = vpop.f32.mrf.mxu0
  %v2404 = vadd.f32 %v2351, %v2403
  %v2405 = vpop.f32.mrf.mxu0
  %v2406 = vadd.f32 %v2353, %v2405
  %2407 = vmatprep.mubr.bf16.mxu0 %v1239
  %2408 = vmatmul.mubr.bf16.gmra.mxu0 %v1238
  %v2409 = vpop.f32.mrf.mxu0
  %v2410 = vadd.f32 %v2357, %v2409
  %v2411 = vpop.f32.mrf.mxu0
  %v2412 = vadd.f32 %v2359, %v2411
  %v2413 = vpop.f32.mrf.mxu0
  %v2414 = vadd.f32 %v2361, %v2413
  %v2415 = vpop.f32.mrf.mxu0
  %v2416 = vadd.f32 %v2363, %v2415
  %2417 = vdwg.mxu0
  %2418 = vmatprep.subr.bf16.mxu0 %v2029
  %2419 = vmatpush1.bf16.msra.mxu0 %v2028
  %2420 = vmatprep.subr.bf16.mxu0 %v2027
  %2421 = vmatpush1.bf16.msra.mxu0 %v2026
  %2422 = vmatprep.subr.bf16.mxu0 %v2025
  %2423 = vmatpush1.bf16.msra.mxu0 %v2024
  %2424 = vmatprep.subr.bf16.mxu0 %v2023
  %2425 = vmatpush1.bf16.msra.mxu0 %v2022
  %2426 = vmatprep.subr.bf16.mxu0 %v2021
  %2427 = vmatpush1.bf16.msra.mxu0 %v2020
  %2428 = vmatprep.subr.bf16.mxu0 %v2019
  %2429 = vmatpush1.bf16.msra.mxu0 %v2018
  %2430 = vmatprep.subr.bf16.mxu0 %v2017
  %2431 = vmatpush1.bf16.msra.mxu0 %v2016
  %2432 = vmatprep.subr.bf16.mxu0 %v2015
  %2433 = vmatpush1.bf16.msra.mxu0 %v2014
  %2434 = vmatprep.subr.bf16.mxu0 %v2045
  %2435 = vmatpush2.bf16.msra.mxu0 %v2044
  %2436 = vmatprep.subr.bf16.mxu0 %v2043
  %2437 = vmatpush2.bf16.msra.mxu0 %v2042
  %2438 = vmatprep.subr.bf16.mxu0 %v2041
  %2439 = vmatpush2.bf16.msra.mxu0 %v2040
  %2440 = vmatprep.subr.bf16.mxu0 %v2039
  %2441 = vmatpush2.bf16.msra.mxu0 %v2038
  %2442 = vmatprep.subr.bf16.mxu0 %v2037
  %2443 = vmatpush2.bf16.msra.mxu0 %v2036
  %2444 = vmatprep.subr.bf16.mxu0 %v2035
  %2445 = vmatpush2.bf16.msra.mxu0 %v2034
  %2446 = vmatprep.subr.bf16.mxu0 %v2033
  %2447 = vmatpush2.bf16.msra.mxu0 %v2032
  %2448 = vmatprep.subr.bf16.mxu0 %v2031
  %2449 = vmatpush2.bf16.msra.mxu0 %v2030
  %2450 = vmatprep.mubr.bf16.mxu0 %v1235
  %2451 = vmatmul.mubr.bf16.gmra.mxu0 %v1234
  %v2452 = vpop.f32.mrf.mxu0
  %v2453 = vadd.f32 %v2400, %v2452
  %v2454 = vpop.f32.mrf.mxu0
  %v2455 = vadd.f32 %v2402, %v2454
  %v2456 = vpop.f32.mrf.mxu0
  %v2457 = vadd.f32 %v2404, %v2456
  %v2458 = vpop.f32.mrf.mxu0
  %v2459 = vadd.f32 %v2406, %v2458
  %2460 = vmatprep.mubr.bf16.mxu0 %v1243
  %2461 = vmatmul.mubr.bf16.gmra.mxu0 %v1242
  %v2462 = vpop.f32.mrf.mxu0
  %v2463 = vadd.f32 %v2410, %v2462
  %v2464 = vpop.f32.mrf.mxu0
  %v2465 = vadd.f32 %v2412, %v2464
  %v2466 = vpop.f32.mrf.mxu0
  %v2467 = vadd.f32 %v2414, %v2466
  %v2468 = vpop.f32.mrf.mxu0
  %v2469 = vadd.f32 %v2416, %v2468
  %2470 = vdwg.mxu0
  %v2471 = vmax.f32 %v2453, %v2455
  %v2472 = vmax.f32 %v2457, %v2459
  %v2473 = vmax.f32 %v2463, %v2465
  %v2474 = vmax.f32 %v2467, %v2469
  %v2475 = vmax.f32 %v2471, %v2472
  %v2476 = vmax.f32 %v2473, %v2474
  %v2477 = vld [vmem:[%s4] sm:$0x1]
  %v2479 = vlaneseq
  %v2480 = vshrl.u32 %v2479, 7
  %v2481 = vsub.s32 0, %v2480
  %v2482 = vrot.slane %v2477, %v2481
  %v2484 = vadd.f32 %v2475, %v2482
  %v2485 = vadd.f32 %v2476, %v2482
  %v2486 = vmax.f32 %v2484, 0.0
  %v2487 = vmax.f32 %v2485, 0.0
  %v2488 = vpack.c.bf16 %v2486, %v2486
  %v2489 = vpack.c.bf16 %v2487, %v2487
  %v2490 = vld [vmem:[%s5] sm:$0xff]
  %v2491 = vld [vmem:[%s5 + $0x8] sm:$0xff]
  %v2492 = vld [vmem:[%s5 + $0x10] sm:$0xff]
  %v2493 = vld [vmem:[%s5 + $0x18] sm:$0xff]
  %v2494 = vld [vmem:[%s5 + $0x20] sm:$0xff]
  %v2495 = vld [vmem:[%s5 + $0x28] sm:$0xff]
  %v2496 = vld [vmem:[%s5 + $0x30] sm:$0xff]
  %v2497 = vld [vmem:[%s5 + $0x38] sm:$0xff]
  %v2498 = vld [vmem:[%s5 + $0x40] sm:$0xff]
  %v2499 = vld [vmem:[%s5 + $0x48] sm:$0xff]
  %v2500 = vld [vmem:[%s5 + $0x50] sm:$0xff]
  %v2501 = vld [vmem:[%s5 + $0x58] sm:$0xff]
  %v2502 = vld [vmem:[%s5 + $0x60] sm:$0xff]
  %v2503 = vld [vmem:[%s5 + $0x68] sm:$0xff]
  %v2504 = vld [vmem:[%s5 + $0x70] sm:$0xff]
  %v2505 = vld [vmem:[%s5 + $0x78] sm:$0xff]
  %v2506 = vld [vmem:[%s5 + $0x80] sm:$0xff]
  %v2507 = vld [vmem:[%s5 + $0x88] sm:$0xff]
  %v2508 = vld [vmem:[%s5 + $0x90] sm:$0xff]
  %v2509 = vld [vmem:[%s5 + $0x98] sm:$0xff]
  %v2510 = vld [vmem:[%s5 + $0xa0] sm:$0xff]
  %v2511 = vld [vmem:[%s5 + $0xa8] sm:$0xff]
  %v2512 = vld [vmem:[%s5 + $0xb0] sm:$0xff]
  %v2513 = vld [vmem:[%s5 + $0xb8] sm:$0xff]
  %v2514 = vld [vmem:[%s5 + $0xc0] sm:$0xff]
  %v2515 = vld [vmem:[%s5 + $0xc8] sm:$0xff]
  %v2516 = vld [vmem:[%s5 + $0xd0] sm:$0xff]
  %v2517 = vld [vmem:[%s5 + $0xd8] sm:$0xff]
  %v2518 = vld [vmem:[%s5 + $0xe0] sm:$0xff]
  %v2519 = vld [vmem:[%s5 + $0xe8] sm:$0xff]
  %v2520 = vld [vmem:[%s5 + $0xf0] sm:$0xff]
  %v2521 = vld [vmem:[%s5 + $0xf8] sm:$0xff]
  %v2522 = vld [vmem:[%s6] sm:$0x3]
  %v2524 = vlaneseq
  %v2525 = vshrl.u32 %v2524, 7
  %v2526 = vsub.s32 0, %v2525
  %v2527 = vrot.slane %v2522, %v2526
  %v2528 = vlaneseq
  %v2529 = vshrl.u32 %v2528, 7
  %v2530 = vsub.s32 1, %v2529
  %v2531 = vrot.slane %v2522, %v2530
  %v2566 = vunpack.c.l.b16 %v2490
  %v2567 = vunpack.c.h.b16 %v2490
  %v2568 = vunpack.c.l.b16 %v2491
  %v2569 = vunpack.c.h.b16 %v2491
  %v2570 = vunpack.c.l.b16 %v2492
  %v2571 = vunpack.c.h.b16 %v2492
  %v2572 = vunpack.c.l.b16 %v2493
  %v2573 = vunpack.c.h.b16 %v2493
  %v2574 = vunpack.c.l.b16 %v2494
  %v2575 = vunpack.c.h.b16 %v2494
  %v2576 = vunpack.c.l.b16 %v2495
  %v2577 = vunpack.c.h.b16 %v2495
  %v2578 = vunpack.c.l.b16 %v2496
  %v2579 = vunpack.c.h.b16 %v2496
  %v2580 = vunpack.c.l.b16 %v2497
  %v2581 = vunpack.c.h.b16 %v2497
  %v2582 = vunpack.c.l.b16 %v2498
  %v2583 = vunpack.c.h.b16 %v2498
  %v2584 = vunpack.c.l.b16 %v2499
  %v2585 = vunpack.c.h.b16 %v2499
  %v2586 = vunpack.c.l.b16 %v2500
  %v2587 = vunpack.c.h.b16 %v2500
  %v2588 = vunpack.c.l.b16 %v2501
  %v2589 = vunpack.c.h.b16 %v2501
  %v2590 = vunpack.c.l.b16 %v2502
  %v2591 = vunpack.c.h.b16 %v2502
  %v2592 = vunpack.c.l.b16 %v2503
  %v2593 = vunpack.c.h.b16 %v2503
  %v2594 = vunpack.c.l.b16 %v2504
  %v2595 = vunpack.c.h.b16 %v2504
  %v2596 = vunpack.c.l.b16 %v2505
  %v2597 = vunpack.c.h.b16 %v2505
  %v2598 = vunpack.c.l.b16 %v2506
  %v2599 = vunpack.c.h.b16 %v2506
  %v2600 = vunpack.c.l.b16 %v2507
  %v2601 = vunpack.c.h.b16 %v2507
  %v2602 = vunpack.c.l.b16 %v2508
  %v2603 = vunpack.c.h.b16 %v2508
  %v2604 = vunpack.c.l.b16 %v2509
  %v2605 = vunpack.c.h.b16 %v2509
  %v2606 = vunpack.c.l.b16 %v2510
  %v2607 = vunpack.c.h.b16 %v2510
  %v2608 = vunpack.c.l.b16 %v2511
  %v2609 = vunpack.c.h.b16 %v2511
  %v2610 = vunpack.c.l.b16 %v2512
  %v2611 = vunpack.c.h.b16 %v2512
  %v2612 = vunpack.c.l.b16 %v2513
  %v2613 = vunpack.c.h.b16 %v2513
  %v2614 = vunpack.c.l.b16 %v2514
  %v2615 = vunpack.c.h.b16 %v2514
  %v2616 = vunpack.c.l.b16 %v2515
  %v2617 = vunpack.c.h.b16 %v2515
  %v2618 = vunpack.c.l.b16 %v2516
  %v2619 = vunpack.c.h.b16 %v2516
  %v2620 = vunpack.c.l.b16 %v2517
  %v2621 = vunpack.c.h.b16 %v2517
  %v2622 = vunpack.c.l.b16 %v2518
  %v2623 = vunpack.c.h.b16 %v2518
  %v2624 = vunpack.c.l.b16 %v2519
  %v2625 = vunpack.c.h.b16 %v2519
  %v2626 = vunpack.c.l.b16 %v2520
  %v2627 = vunpack.c.h.b16 %v2520
  %v2628 = vunpack.c.l.b16 %v2521
  %v2629 = vunpack.c.h.b16 %v2521
  %v2630 = vpack.c.b16 %v2568, %v2566
  %v2631 = vpack.c.b16 %v2569, %v2567
  %v2632 = vpack.c.b16 %v2572, %v2570
  %v2633 = vpack.c.b16 %v2573, %v2571
  %v2634 = vpack.c.b16 %v2576, %v2574
  %v2635 = vpack.c.b16 %v2577, %v2575
  %v2636 = vpack.c.b16 %v2580, %v2578
  %v2637 = vpack.c.b16 %v2581, %v2579
  %v2638 = vpack.c.b16 %v2584, %v2582
  %v2639 = vpack.c.b16 %v2585, %v2583
  %v2640 = vpack.c.b16 %v2588, %v2586
  %v2641 = vpack.c.b16 %v2589, %v2587
  %v2642 = vpack.c.b16 %v2592, %v2590
  %v2643 = vpack.c.b16 %v2593, %v2591
  %v2644 = vpack.c.b16 %v2596, %v2594
  %v2645 = vpack.c.b16 %v2597, %v2595
  %v2646 = vpack.c.b16 %v2600, %v2598
  %v2647 = vpack.c.b16 %v2601, %v2599
  %v2648 = vpack.c.b16 %v2604, %v2602
  %v2649 = vpack.c.b16 %v2605, %v2603
  %v2650 = vpack.c.b16 %v2608, %v2606
  %v2651 = vpack.c.b16 %v2609, %v2607
  %v2652 = vpack.c.b16 %v2612, %v2610
  %v2653 = vpack.c.b16 %v2613, %v2611
  %v2654 = vpack.c.b16 %v2616, %v2614
  %v2655 = vpack.c.b16 %v2617, %v2615
  %v2656 = vpack.c.b16 %v2620, %v2618
  %v2657 = vpack.c.b16 %v2621, %v2619
  %v2658 = vpack.c.b16 %v2624, %v2622
  %v2659 = vpack.c.b16 %v2625, %v2623
  %v2660 = vpack.c.b16 %v2628, %v2626
  %v2661 = vpack.c.b16 %v2629, %v2627
  %2694 = vmatprep.subr.bf16.mxu0 %v2645
  %2695 = vmatpush1.bf16.msra.mxu0 %v2644
  %2696 = vmatprep.subr.bf16.mxu0 %v2643
  %2697 = vmatpush1.bf16.msra.mxu0 %v2642
  %2698 = vmatprep.subr.bf16.mxu0 %v2641
  %2699 = vmatpush1.bf16.msra.mxu0 %v2640
  %2700 = vmatprep.subr.bf16.mxu0 %v2639
  %2701 = vmatpush1.bf16.msra.mxu0 %v2638
  %2702 = vmatprep.subr.bf16.mxu0 %v2637
  %2703 = vmatpush1.bf16.msra.mxu0 %v2636
  %2704 = vmatprep.subr.bf16.mxu0 %v2635
  %2705 = vmatpush1.bf16.msra.mxu0 %v2634
  %2706 = vmatprep.subr.bf16.mxu0 %v2633
  %2707 = vmatpush1.bf16.msra.mxu0 %v2632
  %2708 = vmatprep.subr.bf16.mxu0 %v2631
  %2709 = vmatpush1.bf16.msra.mxu0 %v2630
  %2710 = vmatprep.subr.bf16.mxu0 %v2661
  %2711 = vmatpush2.bf16.msra.mxu0 %v2660
  %2712 = vmatprep.subr.bf16.mxu0 %v2659
  %2713 = vmatpush2.bf16.msra.mxu0 %v2658
  %2714 = vmatprep.subr.bf16.mxu0 %v2657
  %2715 = vmatpush2.bf16.msra.mxu0 %v2656
  %2716 = vmatprep.subr.bf16.mxu0 %v2655
  %2717 = vmatpush2.bf16.msra.mxu0 %v2654
  %2718 = vmatprep.subr.bf16.mxu0 %v2653
  %2719 = vmatpush2.bf16.msra.mxu0 %v2652
  %2720 = vmatprep.subr.bf16.mxu0 %v2651
  %2721 = vmatpush2.bf16.msra.mxu0 %v2650
  %2722 = vmatprep.subr.bf16.mxu0 %v2649
  %2723 = vmatpush2.bf16.msra.mxu0 %v2648
  %2724 = vmatprep.subr.bf16.mxu0 %v2647
  %2725 = vmatpush2.bf16.msra.mxu0 %v2646
  %2726 = vmatprep.mubr.bf16.mxu0 %v2489
  %2727 = vmatmul.mubr.bf16.gmra.mxu0 %v2488
  %v2728 = vpop.f32.mrf.mxu0
  %v2729 = vadd.f32 %v2527, %v2728
  %v2730 = vpop.f32.mrf.mxu0
  %v2731 = vadd.f32 %v2531, %v2730
  %v2732 = vpop.f32.mrf.mxu0
  %v2733 = vpop.f32.mrf.mxu0
  %2734 = vdwg.mxu0
  %v2735 = vmax.f32 %v2729, 0.0
  %v2736 = vmax.f32 %v2731, 0.0
  %v2737 = vpack.c.bf16 %v2735, %v2735
  %v2738 = vpack.c.bf16 %v2736, %v2736
  %v2739 = vld [vmem:[%s7] sm:$0xf]
  %v2740 = vld [vmem:[%s7 + $0x4] sm:$0xf]
  %v2741 = vld [vmem:[%s7 + $0x8] sm:$0xf]
  %v2742 = vld [vmem:[%s7 + $0xc] sm:$0xf]
  %v2743 = vld [vmem:[%s7 + $0x10] sm:$0xf]
  %v2744 = vld [vmem:[%s7 + $0x14] sm:$0xf]
  %v2745 = vld [vmem:[%s7 + $0x18] sm:$0xf]
  %v2746 = vld [vmem:[%s7 + $0x1c] sm:$0xf]
  %v2747 = vld [vmem:[%s7 + $0x20] sm:$0xf]
  %v2748 = vld [vmem:[%s7 + $0x24] sm:$0xf]
  %v2749 = vld [vmem:[%s7 + $0x28] sm:$0xf]
  %v2750 = vld [vmem:[%s7 + $0x2c] sm:$0xf]
  %v2751 = vld [vmem:[%s7 + $0x30] sm:$0xf]
  %v2752 = vld [vmem:[%s7 + $0x34] sm:$0xf]
  %v2753 = vld [vmem:[%s7 + $0x38] sm:$0xf]
  %v2754 = vld [vmem:[%s7 + $0x3c] sm:$0xf]
  %v2755 = vld [vmem:[%s7 + $0x40] sm:$0xf]
  %v2756 = vld [vmem:[%s7 + $0x44] sm:$0xf]
  %v2757 = vld [vmem:[%s7 + $0x48] sm:$0xf]
  %v2758 = vld [vmem:[%s7 + $0x4c] sm:$0xf]
  %v2759 = vld [vmem:[%s7 + $0x50] sm:$0xf]
  %v2760 = vld [vmem:[%s7 + $0x54] sm:$0xf]
  %v2761 = vld [vmem:[%s7 + $0x58] sm:$0xf]
  %v2762 = vld [vmem:[%s7 + $0x5c] sm:$0xf]
  %v2763 = vld [vmem:[%s7 + $0x60] sm:$0xf]
  %v2764 = vld [vmem:[%s8] sm:$0x1]
  %v2766 = vlaneseq
  %v2767 = vshrl.u32 %v2766, 7
  %v2768 = vsub.s32 0, %v2767
  %v2769 = vrot.slane %v2764, %v2768
  %v2796 = vunpack.c.l.b16 %v2739
  %v2797 = vunpack.c.l.b16 %v2740
  %v2798 = vunpack.c.l.b16 %v2741
  %v2799 = vunpack.c.l.b16 %v2742
  %v2800 = vunpack.c.l.b16 %v2743
  %v2801 = vunpack.c.l.b16 %v2744
  %v2802 = vunpack.c.l.b16 %v2745
  %v2803 = vunpack.c.l.b16 %v2746
  %v2804 = vunpack.c.l.b16 %v2747
  %v2805 = vunpack.c.l.b16 %v2748
  %v2806 = vunpack.c.l.b16 %v2749
  %v2807 = vunpack.c.l.b16 %v2750
  %v2808 = vunpack.c.l.b16 %v2751
  %v2809 = vunpack.c.l.b16 %v2752
  %v2810 = vunpack.c.l.b16 %v2753
  %v2811 = vunpack.c.l.b16 %v2754
  %v2812 = vunpack.c.l.b16 %v2755
  %v2813 = vunpack.c.l.b16 %v2756
  %v2814 = vunpack.c.l.b16 %v2757
  %v2815 = vunpack.c.l.b16 %v2758
  %v2816 = vunpack.c.l.b16 %v2759
  %v2817 = vunpack.c.l.b16 %v2760
  %v2818 = vunpack.c.l.b16 %v2761
  %v2819 = vunpack.c.l.b16 %v2762
  %v2820 = vunpack.c.l.b16 %v2763
  %v2821 = vpack.c.b16 %v2797, %v2796
  %v2822 = vpack.c.b16 %v2799, %v2798
  %v2823 = vpack.c.b16 %v2801, %v2800
  %v2824 = vpack.c.b16 %v2803, %v2802
  %v2825 = vpack.c.b16 %v2805, %v2804
  %v2826 = vpack.c.b16 %v2807, %v2806
  %v2827 = vpack.c.b16 %v2809, %v2808
  %v2828 = vpack.c.b16 %v2811, %v2810
  %v2829 = vpack.c.b16 %v2813, %v2812
  %v2830 = vpack.c.b16 %v2815, %v2814
  %v2831 = vpack.c.b16 %v2817, %v2816
  %v2832 = vpack.c.b16 %v2819, %v2818
  %v2833 = vpack.c.b16 %v2820, %v2820
  %vm2846 = vcmask 588800
  %v2848 = vsel %vm2846, %v2738, 0
  %vm2850 = vcmask 1043456
  %v2852 = vsel %vm2850, %v2833, 0
  %2854 = vmatprep.subr.bf16.mxu0 0
  %2855 = vmatpush1.bf16.msra.mxu0 %v2828
  %2856 = vmatprep.subr.bf16.mxu0 0
  %2857 = vmatpush1.bf16.msra.mxu0 %v2827
  %2858 = vmatprep.subr.bf16.mxu0 0
  %2859 = vmatpush1.bf16.msra.mxu0 %v2826
  %2860 = vmatprep.subr.bf16.mxu0 0
  %2861 = vmatpush1.bf16.msra.mxu0 %v2825
  %2862 = vmatprep.subr.bf16.mxu0 0
  %2863 = vmatpush1.bf16.msra.mxu0 %v2824
  %2864 = vmatprep.subr.bf16.mxu0 0
  %2865 = vmatpush1.bf16.msra.mxu0 %v2823
  %2866 = vmatprep.subr.bf16.mxu0 0
  %2867 = vmatpush1.bf16.msra.mxu0 %v2822
  %2868 = vmatprep.subr.bf16.mxu0 0
  %2869 = vmatpush1.bf16.msra.mxu0 %v2821
  %2870 = vmatprep.subr.bf16.mxu0 0
  %2871 = vmatpush2.bf16.msra.mxu0 0
  %2872 = vmatprep.subr.bf16.mxu0 0
  %2873 = vmatpush2.bf16.msra.mxu0 0
  %2874 = vmatprep.subr.bf16.mxu0 0
  %2875 = vmatpush2.bf16.msra.mxu0 0
  %2876 = vmatprep.subr.bf16.mxu0 0
  %2877 = vmatpush2.bf16.msra.mxu0 %v2852
  %2878 = vmatprep.subr.bf16.mxu0 0
  %2879 = vmatpush2.bf16.msra.mxu0 %v2832
  %2880 = vmatprep.subr.bf16.mxu0 0
  %2881 = vmatpush2.bf16.msra.mxu0 %v2831
  %2882 = vmatprep.subr.bf16.mxu0 0
  %2883 = vmatpush2.bf16.msra.mxu0 %v2830
  %2884 = vmatprep.subr.bf16.mxu0 0
  %2885 = vmatpush2.bf16.msra.mxu0 %v2829
  %2886 = vmatprep.mubr.bf16.mxu0 %v2848
  %2887 = vmatmul.mubr.bf16.gmra.mxu0 %v2737
  %v2888 = vpop.f32.mrf.mxu0
  %v2889 = vadd.f32 %v2769, %v2888
  %v2890 = vpop.f32.mrf.mxu0
  %v2891 = vpop.f32.mrf.mxu0
  %v2892 = vpop.f32.mrf.mxu0
  %2893 = vdwg.mxu0
  %2894 = vst [vmem:[%s9] sm:$0xff] %v2889
  // Predicated region
  $region38: #{net_forward.1} parent=0 // pred_check
    _
  $region39: #{net_forward.1} parent=0 // pred_check_branch
    %2896 = sbr.rel (0) target = $region41
  $region40: #{net_forward.1} parent=0 // pred_region
    _
  $region41: #{net_forward.1} parent=0 // pred_fallthru
    _
  // Predicated region
  $region42: #{net_forward.1} parent=0 // pred_check
    _
  $region43: #{net_forward.1} parent=0 // pred_check_branch
    %2898 = sbr.rel (0) target = $region45
  $region44: #{net_forward.1} parent=0 // pred_region
    _
  $region45: #{net_forward.1} parent=0 // pred_fallthru
    _

</llo_original>
